<compile_context>
chip_gen: v6e
topology: v6e:2x2x1
jax: 0.10.0
libtpu: 0.0.40
codegen_flags: <defaults>
</compile_context>

<pallas_src>
import functools
import math

import jax
import jax.numpy as jnp
from jax.experimental import pallas as pl
from jax.experimental.pallas import tpu as pltpu


# ----------------------------- in-kernel helpers -----------------------------

def _layer_norm(x, w, b, eps=1e-5):
    mu = jnp.mean(x, axis=-1, keepdims=True)
    xc = x - mu
    var = jnp.mean(xc * xc, axis=-1, keepdims=True)
    return xc * jax.lax.rsqrt(var + eps) * w + b


def _gelu(x):
    # exact (erf) GELU, matching ESM-2.
    # TODO(synk): tanh-approx GELU would run on the EUP (free slot) if exact
    #             bit-parity with ESM-2 is not required.
    return 0.5 * x * (1.0 + jax.lax.erf(x * (1.0 / math.sqrt(2.0))))


# ------------------------- fused transformer trunk ----------------------------

def _trunk_kernel(flags_ref,                       # SMEM (L+1,) int32: repr-layer flags
                  x_ref,                           # (1, T, D) embedded tokens
                  ln1w_ref, ln1b_ref, wqkv_ref, bqkv_ref, wo_ref, bo_ref,
                  ln2w_ref, ln2b_ref, w1_ref, b1_ref, w2_ref, b2_ref,
                  flnw_ref, flnb_ref,
                  h_out_ref, repr_out_ref,         # (1, T, D) outputs
                  x_sc, r_sc,                      # VMEM scratch (T, D) f32
                  *, num_heads, inv_num_repr):
    l = pl.program_id(1)
    num_layers = pl.num_programs(1)

    @pl.when(l == 0)
    def _init():
        x0 = x_ref[0]
        x_sc[...] = x0
        # hidden index 0 == embedding output
        r_sc[...] = flags_ref[0].astype(jnp.float32) * x0

    x = x_sc[...]                                   # (T, D) f32 residual stream
    D = x.shape[-1]
    dh = D // num_heads

    # ---------------- self-attention (pre-LN) ----------------
    h = _layer_norm(x, ln1w_ref[0], ln1b_ref[0])
    qkv = jnp.dot(h.astype(jnp.bfloat16), wqkv_ref[0],
                  preferred_element_type=jnp.float32) + bqkv_ref[0]    # (T, 3D)
    q, k, v = qkv[:, :D], qkv[:, D:2 * D], qkv[:, 2 * D:]
    # head-major (H, T, dh); the 1/sqrt(dh) scale is folded into W_q at init.
    qh = jnp.stack([q[:, i * dh:(i + 1) * dh] for i in range(num_heads)],
                   axis=0).astype(jnp.bfloat16)
    kh = jnp.stack([k[:, i * dh:(i + 1) * dh] for i in range(num_heads)],
                   axis=0).astype(jnp.bfloat16)
    vh = jnp.stack([v[:, i * dh:(i + 1) * dh] for i in range(num_heads)],
                   axis=0).astype(jnp.bfloat16)

    s = jnp.einsum('hqd,hkd->hqk', qh, kh,
                   preferred_element_type=jnp.float32)                 # (H, T, T)
    p = jax.nn.softmax(s, axis=-1)                                     # f32
    o = jnp.einsum('hqk,hkd->hqd', p.astype(jnp.bfloat16), vh,
                   preferred_element_type=jnp.float32)                 # (H, T, dh)
    ctx = jnp.einsum('hqd,hde->hqe', o.astype(jnp.bfloat16), wo_ref[0],
                     preferred_element_type=jnp.float32)               # (H, T, D)
    x = x + jnp.sum(ctx, axis=0) + bo_ref[0]

    # ---------------- feed-forward (pre-LN) ----------------
    h2 = _layer_norm(x, ln2w_ref[0], ln2b_ref[0])
    f = jnp.dot(h2.astype(jnp.bfloat16), w1_ref[0],
                preferred_element_type=jnp.float32) + b1_ref[0]
    f = _gelu(f)
    f = jnp.dot(f.astype(jnp.bfloat16), w2_ref[0],
                preferred_element_type=jnp.float32) + b2_ref[0]
    x = x + f
    x_sc[...] = x

    last = l == num_layers - 1

    @pl.when(jnp.logical_not(last))
    def _accum():
        r_sc[...] = r_sc[...] + flags_ref[l + 1].astype(jnp.float32) * x

    @pl.when(last)
    def _finalize():
        xf = _layer_norm(x, flnw_ref[...], flnb_ref[...])
        h_out_ref[0] = xf
        # ESM overwrites the last-layer representation with the post-final-LN state.
        repr_out_ref[0] = (r_sc[...] +
                           flags_ref[l + 1].astype(jnp.float32) * xf) * inv_num_repr


def transformer_trunk(x_embed, params, repr_flags, *, num_heads, num_repr):
    B, T, D = x_embed.shape
    L = params['wqkv'].shape[0]

    layer_ws = [params[k] for k in
                ('ln1_w', 'ln1_b', 'wqkv', 'bqkv', 'wo_h', 'bo',
                 'ln2_w', 'ln2_b', 'w1', 'b1', 'w2', 'b2')]

    def layer_spec(a):
        nd = a.ndim
        return pl.BlockSpec((1,) + a.shape[1:],
                            lambda b, l, _nd=nd: (l,) + (0,) * (_nd - 1))

    in_specs = ([pl.BlockSpec(memory_space=pltpu.MemorySpace.SMEM),     # repr flags
                 pl.BlockSpec((1, T, D), lambda b, l: (b, 0, 0))]       # embeddings
                + [layer_spec(a) for a in layer_ws]
                + [pl.BlockSpec((1, D), lambda b, l: (0, 0)),           # final LN w
                   pl.BlockSpec((1, D), lambda b, l: (0, 0))])          # final LN b

    out_specs = (pl.BlockSpec((1, T, D), lambda b, l: (b, 0, 0)),
                 pl.BlockSpec((1, T, D), lambda b, l: (b, 0, 0)))

    return pl.pallas_call(
        functools.partial(_trunk_kernel, num_heads=num_heads,
                          inv_num_repr=1.0 / num_repr),
        out_shape=(jax.ShapeDtypeStruct((B, T, D), jnp.float32),
                   jax.ShapeDtypeStruct((B, T, D), jnp.float32)),
        grid=(B, L),
        in_specs=in_specs,
        out_specs=out_specs,
        scratch_shapes=[pltpu.VMEM((T, D), jnp.float32),   # residual stream
                        pltpu.VMEM((T, D), jnp.float32)],  # repr running sum
        compiler_params=pltpu.CompilerParams(
            dimension_semantics=("parallel", "arbitrary")),
    )(repr_flags, x_embed, *layer_ws, params['final_ln_w'], params['final_ln_b'])


# --------------------------------- LM head ------------------------------------

def _lm_head_kernel(x_ref, dw_ref, db_ref, lnw_ref, lnb_ref, pw_ref, pb_ref, out_ref):
    """RoBERTa-style LM head: dense -> gelu -> LN -> tied projection (+bias)."""
    x = x_ref[0]                                    # (T, D) f32
    h = jnp.dot(x.astype(jnp.bfloat16), dw_ref[...],
                preferred_element_type=jnp.float32) + db_ref[...]
    h = _layer_norm(_gelu(h), lnw_ref[...], lnb_ref[...])
    out_ref[0] = jnp.dot(h.astype(jnp.bfloat16), pw_ref[...],
                         preferred_element_type=jnp.float32) + pb_ref[...]


def lm_head(x, params):
    B, T, D = x.shape
    Vp = params['lm_proj_w'].shape[-1]              # lane-dense padded vocab
    args = [params['lm_dense_w'], params['lm_dense_b'],
            params['lm_ln_w'], params['lm_ln_b'],
            params['lm_proj_w'], params['lm_bias_p']]

    def full_spec(a):
        nd = a.ndim
        return pl.BlockSpec(a.shape, lambda b, _nd=nd: (0,) * _nd)

    return pl.pallas_call(
        _lm_head_kernel,
        out_shape=jax.ShapeDtypeStruct((B, T, Vp), jnp.float32),
        grid=(B,),
        in_specs=[pl.BlockSpec((1, T, D), lambda b: (b, 0, 0))]
                 + [full_spec(a) for a in args],
        out_specs=pl.BlockSpec((1, T, Vp), lambda b: (b, 0, 0)),
        compiler_params=pltpu.CompilerParams(dimension_semantics=("parallel",)),
    )(x, *args)


# ------------------------------- model / params -------------------------------

def init_params(key, vocab, D, F, num_layers, num_heads, lane=128):
    dh = D // num_heads
    L = num_layers
    ks = jax.random.split(key, 8)

    def nrm(k, shape, scale=0.02):
        return (scale * jax.random.normal(k, shape)).astype(jnp.float32)

    ones3 = lambda d: jnp.ones((L, 1, d), jnp.float32)
    zeros3 = lambda d: jnp.zeros((L, 1, d), jnp.float32)

    embed = nrm(ks[0], (vocab, D))
    wq = nrm(ks[1], (L, D, D)) * (1.0 / math.sqrt(dh))   # attention scale folded in
    wk = nrm(ks[2], (L, D, D))
    wv = nrm(ks[3], (L, D, D))
    wo = nrm(ks[4], (L, D, D))
    w1 = nrm(ks[5], (L, D, F))
    w2 = nrm(ks[6], (L, F, D))
    lm_dense_w = nrm(ks[7], (D, D))

    Vp = ((vocab + lane - 1) // lane) * lane             # lane-dense LM-head output
    lm_proj_w = jnp.zeros((D, Vp), jnp.float32).at[:, :vocab].set(embed.T)

    return {
        'embed': embed,
        'vocab': vocab,
        # ---- fused trunk (stacked per-layer; matmul weights bf16) ----
        'ln1_w': ones3(D), 'ln1_b': zeros3(D),
        'wqkv': jnp.concatenate([wq, wk, wv], axis=-1).astype(jnp.bfloat16),  # (L, D, 3D)
        'bqkv': zeros3(3 * D),
        'wo_h': wo.reshape(L, num_heads, dh, D).astype(jnp.bfloat16),         # (L, H, dh, D)
        'bo': zeros3(D),
        'ln2_w': ones3(D), 'ln2_b': zeros3(D),
        'w1': w1.astype(jnp.bfloat16), 'b1': zeros3(F),
        'w2': w2.astype(jnp.bfloat16), 'b2': zeros3(D),
        'final_ln_w': jnp.ones((1, D), jnp.float32),
        'final_ln_b': jnp.zeros((1, D), jnp.float32),
        # ---- LM head (tied embedding transposed + vocab-padded once) ----
        'lm_dense_w': lm_dense_w.astype(jnp.bfloat16),
        'lm_dense_b': jnp.zeros((1, D), jnp.float32),
        'lm_ln_w': jnp.ones((1, D), jnp.float32),
        'lm_ln_b': jnp.zeros((1, D), jnp.float32),
        'lm_proj_w': lm_proj_w.astype(jnp.bfloat16),
        'lm_bias_p': jnp.zeros((1, Vp), jnp.float32),
    }


def esm_model_forward(tokens, params, *, num_heads, repr_layers):
    """Mirrors ESMModel.forward with layer_fusion='mean', return_contacts=False,
    projection=None."""
    vocab = params['vocab']
    num_layers = params['wqkv'].shape[0]

    # embedding lookup (JAX glue)
    x = jnp.take(params['embed'], tokens, axis=0)        # (B, T, D)

    flags = [0] * (num_layers + 1)
    for l in repr_layers:
        flags[l] = 1
    repr_flags = jnp.asarray(flags, dtype=jnp.int32)

    h_final, representations = transformer_trunk(
        x, params, repr_flags, num_heads=num_heads, num_repr=len(repr_layers))

    logits = lm_head(h_final, params)[:, :, :vocab]      # drop vocab padding

    return {'logits': logits, 'contacts': None, 'representations': representations}


# ----------------------------------- main --------------------------------------

if __name__ == "__main__":
    B, T = 2, 8          # batch, sequence length
    D, H, F = 32, 4, 64  # embed dim, heads, ffn dim
    VOCAB = 33           # ESM alphabet size
    NUM_LAYERS = 2
    REPR_LAYERS = [1, 2]  # fused with 'mean'

    key = jax.random.PRNGKey(0)
    pkey, tkey = jax.random.split(key)
    params = init_params(pkey, VOCAB, D, F, NUM_LAYERS, H)
    tokens = jax.random.randint(tkey, (B, T), 0, VOCAB, dtype=jnp.int32)

    out = esm_model_forward(tokens, params, num_heads=H, repr_layers=REPR_LAYERS)
    jax.block_until_ready(out['logits'])
    jax.block_until_ready(out['representations'])

    assert out['logits'].shape == (B, T, VOCAB)
    assert out['representations'].shape == (B, T, D)
    assert out['contacts'] is None
    assert bool(jnp.all(jnp.isfinite(out['logits'])))
    assert bool(jnp.all(jnp.isfinite(out['representations'])))

    print("KERNEL_OK")
</pallas_src>

<mosaic_0001>
module attributes {stable_mosaic.version = 11 : i64} {
  func.func @_trunk_kernel(%arg0: i32, %arg1: i32, %arg2: memref<3xi32, #tpu.memory_space<smem>>, %arg3: memref<1x8x32xf32, #tpu.memory_space<vmem>>, %arg4: memref<1x1x32xf32, #tpu.memory_space<vmem>>, %arg5: memref<1x1x32xf32, #tpu.memory_space<vmem>>, %arg6: memref<1x32x96xbf16, #tpu.memory_space<vmem>>, %arg7: memref<1x1x96xf32, #tpu.memory_space<vmem>>, %arg8: memref<1x4x8x32xbf16, #tpu.memory_space<vmem>>, %arg9: memref<1x1x32xf32, #tpu.memory_space<vmem>>, %arg10: memref<1x1x32xf32, #tpu.memory_space<vmem>>, %arg11: memref<1x1x32xf32, #tpu.memory_space<vmem>>, %arg12: memref<1x32x64xbf16, #tpu.memory_space<vmem>>, %arg13: memref<1x1x64xf32, #tpu.memory_space<vmem>>, %arg14: memref<1x64x32xbf16, #tpu.memory_space<vmem>>, %arg15: memref<1x1x32xf32, #tpu.memory_space<vmem>>, %arg16: memref<1x32xf32, #tpu.memory_space<vmem>>, %arg17: memref<1x32xf32, #tpu.memory_space<vmem>>, %arg18: memref<1x8x32xf32, #tpu.memory_space<vmem>>, %arg19: memref<1x8x32xf32, #tpu.memory_space<vmem>>, %arg20: memref<8x32xf32, #tpu.memory_space<vmem>>, %arg21: memref<8x32xf32, #tpu.memory_space<vmem>>) attributes {dimension_semantics = [#tpu.dimension_semantics<parallel>, #tpu.dimension_semantics<arbitrary>], iteration_bounds = array<i64: 2, 2>, scalar_prefetch = 0 : i64, scratch_operands = 2 : i64, tpu.core_type = #tpu.core_type<tc>, window_params = [{transform_indices = @transform_0, window_bounds = array<i64: 3>}, {transform_indices = @transform_1, window_bounds = array<i64: 1, 8, 32>}, {transform_indices = @transform_2, window_bounds = array<i64: 1, 1, 32>}, {transform_indices = @transform_3, window_bounds = array<i64: 1, 1, 32>}, {transform_indices = @transform_4, window_bounds = array<i64: 1, 32, 96>}, {transform_indices = @transform_5, window_bounds = array<i64: 1, 1, 96>}, {transform_indices = @transform_6, window_bounds = array<i64: 1, 4, 8, 32>}, {transform_indices = @transform_7, window_bounds = array<i64: 1, 1, 32>}, {transform_indices = @transform_8, window_bounds = array<i64: 1, 1, 32>}, {transform_indices = @transform_9, window_bounds = array<i64: 1, 1, 32>}, {transform_indices = @transform_10, window_bounds = array<i64: 1, 32, 64>}, {transform_indices = @transform_11, window_bounds = array<i64: 1, 1, 64>}, {transform_indices = @transform_12, window_bounds = array<i64: 1, 64, 32>}, {transform_indices = @transform_13, window_bounds = array<i64: 1, 1, 32>}, {pipeline_mode = #tpu.pipeline_mode<synchronous>, transform_indices = @transform_14, window_bounds = array<i64: 1, 32>}, {pipeline_mode = #tpu.pipeline_mode<synchronous>, transform_indices = @transform_15, window_bounds = array<i64: 1, 32>}, {transform_indices = @transform_16, window_bounds = array<i64: 1, 8, 32>}, {transform_indices = @transform_17, window_bounds = array<i64: 1, 8, 32>}]} {
    %c0_i32 = arith.constant 0 : i32
    %0 = arith.cmpi eq, %arg1, %c0_i32 : i32
    %1 = arith.extui %0 : i1 to i32
    %c0_i32_0 = arith.constant 0 : i32
    %2 = arith.cmpi ne, %1, %c0_i32_0 : i32
    scf.if %2 {
      %c0_65 = arith.constant 0 : index
      %c0_66 = arith.constant 0 : index
      %c0_67 = arith.constant 0 : index
      %149 = vector.load %arg3[%c0_65, %c0_66, %c0_67] : memref<1x8x32xf32, #tpu.memory_space<vmem>>, vector<1x8x32xf32>
      %150 = vector.shape_cast %149 : vector<1x8x32xf32> to vector<8x32xf32>
      %c0_68 = arith.constant 0 : index
      %c0_69 = arith.constant 0 : index
      %151 = vector.load %arg20[%c0_68, %c0_69] : memref<8x32xf32, #tpu.memory_space<vmem>>, vector<8x32xf32>
      tpu.vector_store %arg20[%c0_68, %c0_69], %150 {strides = array<i32>} : memref<8x32xf32, #tpu.memory_space<vmem>>, vector<8x32xf32>,
      %c0_70 = arith.constant 0 : index
      %152 = memref.load %arg2[%c0_70] : memref<3xi32, #tpu.memory_space<smem>>
      %153 = arith.sitofp %152 : i32 to f32
      %154 = vector.broadcast %153 : f32 to vector<8x32xf32>
      %155 = arith.mulf %154, %150 : vector<8x32xf32>
      %c0_71 = arith.constant 0 : index
      %c0_72 = arith.constant 0 : index
      %156 = vector.load %arg21[%c0_71, %c0_72] : memref<8x32xf32, #tpu.memory_space<vmem>>, vector<8x32xf32>
      tpu.vector_store %arg21[%c0_71, %c0_72], %155 {strides = array<i32>} : memref<8x32xf32, #tpu.memory_space<vmem>>, vector<8x32xf32>,
    } else {
    }
    %c0 = arith.constant 0 : index
    %c0_1 = arith.constant 0 : index
    %3 = vector.load %arg20[%c0, %c0_1] : memref<8x32xf32, #tpu.memory_space<vmem>>, vector<8x32xf32>
    %c0_2 = arith.constant 0 : index
    %c0_3 = arith.constant 0 : index
    %c0_4 = arith.constant 0 : index
    %4 = vector.load %arg4[%c0_2, %c0_3, %c0_4] : memref<1x1x32xf32, #tpu.memory_space<vmem>>, vector<1x1x32xf32>
    %5 = vector.shape_cast %4 : vector<1x1x32xf32> to vector<1x32xf32>
    %c0_5 = arith.constant 0 : index
    %c0_6 = arith.constant 0 : index
    %c0_7 = arith.constant 0 : index
    %6 = vector.load %arg5[%c0_5, %c0_6, %c0_7] : memref<1x1x32xf32, #tpu.memory_space<vmem>>, vector<1x1x32xf32>
    %7 = vector.shape_cast %6 : vector<1x1x32xf32> to vector<1x32xf32>
    %cst = arith.constant dense<0.000000e+00> : vector<8xf32>
    %8 = vector.multi_reduction <add>, %3, %cst [1] : vector<8x32xf32> to vector<8xf32>
    %9 = vector.shape_cast %8 : vector<8xf32> to vector<8x1xf32>
    %cst_8 = arith.constant 3.200000e+01 : f32
    %10 = vector.broadcast %cst_8 : f32 to vector<8x1xf32>
    %11 = arith.divf %9, %10 : vector<8x1xf32>
    %12 = vector.broadcast %11 : vector<8x1xf32> to vector<8x32xf32>
    %13 = arith.subf %3, %12 : vector<8x32xf32>
    %14 = arith.mulf %13, %13 : vector<8x32xf32>
    %cst_9 = arith.constant dense<0.000000e+00> : vector<8xf32>
    %15 = vector.multi_reduction <add>, %14, %cst_9 [1] : vector<8x32xf32> to vector<8xf32>
    %16 = vector.shape_cast %15 : vector<8xf32> to vector<8x1xf32>
    %cst_10 = arith.constant 3.200000e+01 : f32
    %17 = vector.broadcast %cst_10 : f32 to vector<8x1xf32>
    %18 = arith.divf %16, %17 : vector<8x1xf32>
    %cst_11 = arith.constant 9.99999974E-6 : f32
    %19 = vector.broadcast %cst_11 : f32 to vector<8x1xf32>
    %20 = arith.addf %18, %19 : vector<8x1xf32>
    %21 = math.rsqrt %20 : vector<8x1xf32>
    %22 = vector.broadcast %21 : vector<8x1xf32> to vector<8x32xf32>
    %23 = arith.mulf %13, %22 : vector<8x32xf32>
    %24 = vector.broadcast %5 : vector<1x32xf32> to vector<8x32xf32>
    %25 = arith.mulf %23, %24 : vector<8x32xf32>
    %26 = vector.broadcast %7 : vector<1x32xf32> to vector<8x32xf32>
    %27 = arith.addf %25, %26 : vector<8x32xf32>
    %28 = arith.truncf %27 : vector<8x32xf32> to vector<8x32xbf16>
    %c0_12 = arith.constant 0 : index
    %c0_13 = arith.constant 0 : index
    %c0_14 = arith.constant 0 : index
    %29 = vector.load %arg6[%c0_12, %c0_13, %c0_14] : memref<1x32x96xbf16, #tpu.memory_space<vmem>>, vector<1x32x96xbf16>
    %30 = vector.shape_cast %29 : vector<1x32x96xbf16> to vector<32x96xbf16>
    %cst_15 = arith.constant dense<0.000000e+00> : vector<8x96xf32>
    %31 = tpu.matmul %28, %30, %cst_15 {dimension_numbers = #tpu.dot_dimension_numbers<[1], [0], [0], [1], [0, 0, 1, 1], [], []>} : vector<8x32xbf16>, vector<32x96xbf16>, vector<8x96xf32> -> vector<8x96xf32>
    %c0_16 = arith.constant 0 : index
    %c0_17 = arith.constant 0 : index
    %c0_18 = arith.constant 0 : index
    %32 = vector.load %arg7[%c0_16, %c0_17, %c0_18] : memref<1x1x96xf32, #tpu.memory_space<vmem>>, vector<1x1x96xf32>
    %33 = vector.shape_cast %32 : vector<1x1x96xf32> to vector<1x96xf32>
    %34 = vector.broadcast %33 : vector<1x96xf32> to vector<8x96xf32>
    %35 = arith.addf %31, %34 : vector<8x96xf32>
    %36 = vector.extract_strided_slice %35 {offsets = [0, 0], sizes = [8, 32], strides = [1, 1]} : vector<8x96xf32> to vector<8x32xf32>
    %37 = vector.extract_strided_slice %35 {offsets = [0, 32], sizes = [8, 32], strides = [1, 1]} : vector<8x96xf32> to vector<8x32xf32>
    %38 = vector.extract_strided_slice %35 {offsets = [0, 64], sizes = [8, 32], strides = [1, 1]} : vector<8x96xf32> to vector<8x32xf32>
    %39 = vector.extract_strided_slice %36 {offsets = [0, 0], sizes = [8, 8], strides = [1, 1]} : vector<8x32xf32> to vector<8x8xf32>
    %40 = vector.extract_strided_slice %36 {offsets = [0, 8], sizes = [8, 8], strides = [1, 1]} : vector<8x32xf32> to vector<8x8xf32>
    %41 = vector.extract_strided_slice %36 {offsets = [0, 16], sizes = [8, 8], strides = [1, 1]} : vector<8x32xf32> to vector<8x8xf32>
    %42 = vector.extract_strided_slice %36 {offsets = [0, 24], sizes = [8, 8], strides = [1, 1]} : vector<8x32xf32> to vector<8x8xf32>
    %43 = vector.shape_cast %39 : vector<8x8xf32> to vector<1x8x8xf32>
    %44 = vector.shape_cast %40 : vector<8x8xf32> to vector<1x8x8xf32>
    %45 = vector.shape_cast %41 : vector<8x8xf32> to vector<1x8x8xf32>
    %46 = vector.shape_cast %42 : vector<8x8xf32> to vector<1x8x8xf32>
    %47 = tpu.concatenate %43, %44, %45, %46 in 0 : vector<1x8x8xf32>, vector<1x8x8xf32>, vector<1x8x8xf32>, vector<1x8x8xf32> -> vector<4x8x8xf32>
    %48 = arith.truncf %47 : vector<4x8x8xf32> to vector<4x8x8xbf16>
    %49 = vector.extract_strided_slice %37 {offsets = [0, 0], sizes = [8, 8], strides = [1, 1]} : vector<8x32xf32> to vector<8x8xf32>
    %50 = vector.extract_strided_slice %37 {offsets = [0, 8], sizes = [8, 8], strides = [1, 1]} : vector<8x32xf32> to vector<8x8xf32>
    %51 = vector.extract_strided_slice %37 {offsets = [0, 16], sizes = [8, 8], strides = [1, 1]} : vector<8x32xf32> to vector<8x8xf32>
    %52 = vector.extract_strided_slice %37 {offsets = [0, 24], sizes = [8, 8], strides = [1, 1]} : vector<8x32xf32> to vector<8x8xf32>
    %53 = vector.shape_cast %49 : vector<8x8xf32> to vector<1x8x8xf32>
    %54 = vector.shape_cast %50 : vector<8x8xf32> to vector<1x8x8xf32>
    %55 = vector.shape_cast %51 : vector<8x8xf32> to vector<1x8x8xf32>
    %56 = vector.shape_cast %52 : vector<8x8xf32> to vector<1x8x8xf32>
    %57 = tpu.concatenate %53, %54, %55, %56 in 0 : vector<1x8x8xf32>, vector<1x8x8xf32>, vector<1x8x8xf32>, vector<1x8x8xf32> -> vector<4x8x8xf32>
    %58 = arith.truncf %57 : vector<4x8x8xf32> to vector<4x8x8xbf16>
    %59 = vector.extract_strided_slice %38 {offsets = [0, 0], sizes = [8, 8], strides = [1, 1]} : vector<8x32xf32> to vector<8x8xf32>
    %60 = vector.extract_strided_slice %38 {offsets = [0, 8], sizes = [8, 8], strides = [1, 1]} : vector<8x32xf32> to vector<8x8xf32>
    %61 = vector.extract_strided_slice %38 {offsets = [0, 16], sizes = [8, 8], strides = [1, 1]} : vector<8x32xf32> to vector<8x8xf32>
    %62 = vector.extract_strided_slice %38 {offsets = [0, 24], sizes = [8, 8], strides = [1, 1]} : vector<8x32xf32> to vector<8x8xf32>
    %63 = vector.shape_cast %59 : vector<8x8xf32> to vector<1x8x8xf32>
    %64 = vector.shape_cast %60 : vector<8x8xf32> to vector<1x8x8xf32>
    %65 = vector.shape_cast %61 : vector<8x8xf32> to vector<1x8x8xf32>
    %66 = vector.shape_cast %62 : vector<8x8xf32> to vector<1x8x8xf32>
    %67 = tpu.concatenate %63, %64, %65, %66 in 0 : vector<1x8x8xf32>, vector<1x8x8xf32>, vector<1x8x8xf32>, vector<1x8x8xf32> -> vector<4x8x8xf32>
    %68 = arith.truncf %67 : vector<4x8x8xf32> to vector<4x8x8xbf16>
    "tpu.trace_start"() <{level = 10 : i32, message = "hqd,hkd->hqk"}> : () -> ()
    %cst_19 = arith.constant dense<0.000000e+00> : vector<4x8x8xf32>
    %69 = tpu.matmul %48, %58, %cst_19 {dimension_numbers = #tpu.dot_dimension_numbers<[2], [2], [1], [1], [0, 0, 0, 1, 1, 1], [0], [0]>} : vector<4x8x8xbf16>, vector<4x8x8xbf16>, vector<4x8x8xf32> -> vector<4x8x8xf32>
    "tpu.trace_stop"() : () -> ()
    %cst_20 = arith.constant dense<0xFF800000> : vector<4x8xf32>
    %70 = vector.multi_reduction <maximumf>, %69, %cst_20 [2] : vector<4x8x8xf32> to vector<4x8xf32>
    %cst_21 = arith.constant 0xFF800000 : f32
    %71 = vector.broadcast %cst_21 : f32 to vector<4x8xf32>
    %72 = arith.maximumf %71, %70 : vector<4x8xf32>
    %73 = vector.shape_cast %72 : vector<4x8xf32> to vector<4x8x1xf32>
    %74 = vector.broadcast %73 : vector<4x8x1xf32> to vector<4x8x8xf32>
    %75 = arith.subf %69, %74 : vector<4x8x8xf32>
    %76 = math.exp %75 : vector<4x8x8xf32>
    %cst_22 = arith.constant dense<0.000000e+00> : vector<4x8xf32>
    %77 = vector.multi_reduction <add>, %76, %cst_22 [2] : vector<4x8x8xf32> to vector<4x8xf32>
    %78 = vector.shape_cast %77 : vector<4x8xf32> to vector<4x8x1xf32>
    %79 = vector.broadcast %78 : vector<4x8x1xf32> to vector<4x8x8xf32>
    %80 = arith.divf %76, %79 : vector<4x8x8xf32>
    %81 = arith.truncf %80 : vector<4x8x8xf32> to vector<4x8x8xbf16>
    "tpu.trace_start"() <{level = 10 : i32, message = "hqk,hkd->hqd"}> : () -> ()
    %cst_23 = arith.constant dense<0.000000e+00> : vector<4x8x8xf32>
    %82 = tpu.matmul %81, %68, %cst_23 {dimension_numbers = #tpu.dot_dimension_numbers<[2], [1], [1], [2], [0, 0, 0, 1, 1, 2], [0], [0]>} : vector<4x8x8xbf16>, vector<4x8x8xbf16>, vector<4x8x8xf32> -> vector<4x8x8xf32>
    "tpu.trace_stop"() : () -> ()
    %83 = arith.truncf %82 : vector<4x8x8xf32> to vector<4x8x8xbf16>
    %c0_24 = arith.constant 0 : index
    %c0_25 = arith.constant 0 : index
    %c0_26 = arith.constant 0 : index
    %c0_27 = arith.constant 0 : index
    %84 = vector.load %arg8[%c0_24, %c0_25, %c0_26, %c0_27] : memref<1x4x8x32xbf16, #tpu.memory_space<vmem>>, vector<1x4x8x32xbf16>
    %85 = vector.shape_cast %84 : vector<1x4x8x32xbf16> to vector<4x8x32xbf16>
    "tpu.trace_start"() <{level = 10 : i32, message = "hqd,hde->hqe"}> : () -> ()
    %cst_28 = arith.constant dense<0.000000e+00> : vector<4x8x32xf32>
    %86 = tpu.matmul %83, %85, %cst_28 {dimension_numbers = #tpu.dot_dimension_numbers<[2], [1], [1], [2], [0, 0, 0, 1, 1, 2], [0], [0]>} : vector<4x8x8xbf16>, vector<4x8x32xbf16>, vector<4x8x32xf32> -> vector<4x8x32xf32>
    "tpu.trace_stop"() : () -> ()
    %cst_29 = arith.constant dense<0.000000e+00> : vector<8x32xf32>
    %87 = vector.multi_reduction <add>, %86, %cst_29 [0] : vector<4x8x32xf32> to vector<8x32xf32>
    %88 = arith.addf %3, %87 : vector<8x32xf32>
    %c0_30 = arith.constant 0 : index
    %c0_31 = arith.constant 0 : index
    %c0_32 = arith.constant 0 : index
    %89 = vector.load %arg9[%c0_30, %c0_31, %c0_32] : memref<1x1x32xf32, #tpu.memory_space<vmem>>, vector<1x1x32xf32>
    %90 = vector.shape_cast %89 : vector<1x1x32xf32> to vector<1x32xf32>
    %91 = vector.broadcast %90 : vector<1x32xf32> to vector<8x32xf32>
    %92 = arith.addf %88, %91 : vector<8x32xf32>
    %c0_33 = arith.constant 0 : index
    %c0_34 = arith.constant 0 : index
    %c0_35 = arith.constant 0 : index
    %93 = vector.load %arg10[%c0_33, %c0_34, %c0_35] : memref<1x1x32xf32, #tpu.memory_space<vmem>>, vector<1x1x32xf32>
    %94 = vector.shape_cast %93 : vector<1x1x32xf32> to vector<1x32xf32>
    %c0_36 = arith.constant 0 : index
    %c0_37 = arith.constant 0 : index
    %c0_38 = arith.constant 0 : index
    %95 = vector.load %arg11[%c0_36, %c0_37, %c0_38] : memref<1x1x32xf32, #tpu.memory_space<vmem>>, vector<1x1x32xf32>
    %96 = vector.shape_cast %95 : vector<1x1x32xf32> to vector<1x32xf32>
    %cst_39 = arith.constant dense<0.000000e+00> : vector<8xf32>
    %97 = vector.multi_reduction <add>, %92, %cst_39 [1] : vector<8x32xf32> to vector<8xf32>
    %98 = vector.shape_cast %97 : vector<8xf32> to vector<8x1xf32>
    %cst_40 = arith.constant 3.200000e+01 : f32
    %99 = vector.broadcast %cst_40 : f32 to vector<8x1xf32>
    %100 = arith.divf %98, %99 : vector<8x1xf32>
    %101 = vector.broadcast %100 : vector<8x1xf32> to vector<8x32xf32>
    %102 = arith.subf %92, %101 : vector<8x32xf32>
    %103 = arith.mulf %102, %102 : vector<8x32xf32>
    %cst_41 = arith.constant dense<0.000000e+00> : vector<8xf32>
    %104 = vector.multi_reduction <add>, %103, %cst_41 [1] : vector<8x32xf32> to vector<8xf32>
    %105 = vector.shape_cast %104 : vector<8xf32> to vector<8x1xf32>
    %cst_42 = arith.constant 3.200000e+01 : f32
    %106 = vector.broadcast %cst_42 : f32 to vector<8x1xf32>
    %107 = arith.divf %105, %106 : vector<8x1xf32>
    %cst_43 = arith.constant 9.99999974E-6 : f32
    %108 = vector.broadcast %cst_43 : f32 to vector<8x1xf32>
    %109 = arith.addf %107, %108 : vector<8x1xf32>
    %110 = math.rsqrt %109 : vector<8x1xf32>
    %111 = vector.broadcast %110 : vector<8x1xf32> to vector<8x32xf32>
    %112 = arith.mulf %102, %111 : vector<8x32xf32>
    %113 = vector.broadcast %94 : vector<1x32xf32> to vector<8x32xf32>
    %114 = arith.mulf %112, %113 : vector<8x32xf32>
    %115 = vector.broadcast %96 : vector<1x32xf32> to vector<8x32xf32>
    %116 = arith.addf %114, %115 : vector<8x32xf32>
    %117 = arith.truncf %116 : vector<8x32xf32> to vector<8x32xbf16>
    %c0_44 = arith.constant 0 : index
    %c0_45 = arith.constant 0 : index
    %c0_46 = arith.constant 0 : index
    %118 = vector.load %arg12[%c0_44, %c0_45, %c0_46] : memref<1x32x64xbf16, #tpu.memory_space<vmem>>, vector<1x32x64xbf16>
    %119 = vector.shape_cast %118 : vector<1x32x64xbf16> to vector<32x64xbf16>
    %cst_47 = arith.constant dense<0.000000e+00> : vector<8x64xf32>
    %120 = tpu.matmul %117, %119, %cst_47 {dimension_numbers = #tpu.dot_dimension_numbers<[1], [0], [0], [1], [0, 0, 1, 1], [], []>} : vector<8x32xbf16>, vector<32x64xbf16>, vector<8x64xf32> -> vector<8x64xf32>
    %c0_48 = arith.constant 0 : index
    %c0_49 = arith.constant 0 : index
    %c0_50 = arith.constant 0 : index
    %121 = vector.load %arg13[%c0_48, %c0_49, %c0_50] : memref<1x1x64xf32, #tpu.memory_space<vmem>>, vector<1x1x64xf32>
    %122 = vector.shape_cast %121 : vector<1x1x64xf32> to vector<1x64xf32>
    %123 = vector.broadcast %122 : vector<1x64xf32> to vector<8x64xf32>
    %124 = arith.addf %120, %123 : vector<8x64xf32>
    %cst_51 = arith.constant 5.000000e-01 : f32
    %125 = vector.broadcast %cst_51 : f32 to vector<8x64xf32>
    %126 = arith.mulf %125, %124 : vector<8x64xf32>
    %cst_52 = arith.constant 0.707106769 : f32
    %127 = vector.broadcast %cst_52 : f32 to vector<8x64xf32>
    %128 = arith.mulf %124, %127 : vector<8x64xf32>
    %129 = math.erf %128 : vector<8x64xf32>
    %cst_53 = arith.constant 1.000000e+00 : f32
    %130 = vector.broadcast %cst_53 : f32 to vector<8x64xf32>
    %131 = arith.addf %130, %129 : vector<8x64xf32>
    %132 = arith.mulf %126, %131 : vector<8x64xf32>
    %133 = arith.truncf %132 : vector<8x64xf32> to vector<8x64xbf16>
    %c0_54 = arith.constant 0 : index
    %c0_55 = arith.constant 0 : index
    %c0_56 = arith.constant 0 : index
    %134 = vector.load %arg14[%c0_54, %c0_55, %c0_56] : memref<1x64x32xbf16, #tpu.memory_space<vmem>>, vector<1x64x32xbf16>
    %135 = vector.shape_cast %134 : vector<1x64x32xbf16> to vector<64x32xbf16>
    %cst_57 = arith.constant dense<0.000000e+00> : vector<8x32xf32>
    %136 = tpu.matmul %133, %135, %cst_57 {dimension_numbers = #tpu.dot_dimension_numbers<[1], [0], [0], [1], [0, 0, 1, 1], [], []>} : vector<8x64xbf16>, vector<64x32xbf16>, vector<8x32xf32> -> vector<8x32xf32>
    %c0_58 = arith.constant 0 : index
    %c0_59 = arith.constant 0 : index
    %c0_60 = arith.constant 0 : index
    %137 = vector.load %arg15[%c0_58, %c0_59, %c0_60] : memref<1x1x32xf32, #tpu.memory_space<vmem>>, vector<1x1x32xf32>
    %138 = vector.shape_cast %137 : vector<1x1x32xf32> to vector<1x32xf32>
    %139 = vector.broadcast %138 : vector<1x32xf32> to vector<8x32xf32>
    %140 = arith.addf %136, %139 : vector<8x32xf32>
    %141 = arith.addf %92, %140 : vector<8x32xf32>
    %c0_61 = arith.constant 0 : index
    %c0_62 = arith.constant 0 : index
    %142 = vector.load %arg20[%c0_61, %c0_62] : memref<8x32xf32, #tpu.memory_space<vmem>>, vector<8x32xf32>
    tpu.vector_store %arg20[%c0_61, %c0_62], %141 {strides = array<i32>} : memref<8x32xf32, #tpu.memory_space<vmem>>, vector<8x32xf32>,
    %c1_i32 = arith.constant 1 : i32
    %143 = arith.cmpi eq, %arg1, %c1_i32 : i32
    %true = arith.constant true
    %144 = arith.xori %143, %true : i1
    %145 = arith.extui %144 : i1 to i32
    %c0_i32_63 = arith.constant 0 : i32
    %146 = arith.cmpi ne, %145, %c0_i32_63 : i32
    scf.if %146 {
      %c0_65 = arith.constant 0 : index
      %c0_66 = arith.constant 0 : index
      %149 = vector.load %arg21[%c0_65, %c0_66] : memref<8x32xf32, #tpu.memory_space<vmem>>, vector<8x32xf32>
      %c1_i32_67 = arith.constant 1 : i32
      %150 = arith.addi %arg1, %c1_i32_67 : i32
      %151 = arith.index_cast %150 : i32 to index
      %152 = memref.load %arg2[%151] : memref<3xi32, #tpu.memory_space<smem>>
      %153 = arith.sitofp %152 : i32 to f32
      %154 = vector.broadcast %153 : f32 to vector<8x32xf32>
      %155 = arith.mulf %154, %141 : vector<8x32xf32>
      %156 = arith.addf %149, %155 : vector<8x32xf32>
      %c0_68 = arith.constant 0 : index
      %c0_69 = arith.constant 0 : index
      %157 = vector.load %arg21[%c0_68, %c0_69] : memref<8x32xf32, #tpu.memory_space<vmem>>, vector<8x32xf32>
      tpu.vector_store %arg21[%c0_68, %c0_69], %156 {strides = array<i32>} : memref<8x32xf32, #tpu.memory_space<vmem>>, vector<8x32xf32>,
    } else {
    }
    %147 = arith.extui %143 : i1 to i32
    %c0_i32_64 = arith.constant 0 : i32
    %148 = arith.cmpi ne, %147, %c0_i32_64 : i32
    scf.if %148 {
      %c0_65 = arith.constant 0 : index
      %c0_66 = arith.constant 0 : index
      %149 = vector.load %arg16[%c0_65, %c0_66] : memref<1x32xf32, #tpu.memory_space<vmem>>, vector<1x32xf32>
      %c0_67 = arith.constant 0 : index
      %c0_68 = arith.constant 0 : index
      %150 = vector.load %arg17[%c0_67, %c0_68] : memref<1x32xf32, #tpu.memory_space<vmem>>, vector<1x32xf32>
      %cst_69 = arith.constant dense<0.000000e+00> : vector<8xf32>
      %151 = vector.multi_reduction <add>, %141, %cst_69 [1] : vector<8x32xf32> to vector<8xf32>
      %152 = vector.shape_cast %151 : vector<8xf32> to vector<8x1xf32>
      %cst_70 = arith.constant 3.200000e+01 : f32
      %153 = vector.broadcast %cst_70 : f32 to vector<8x1xf32>
      %154 = arith.divf %152, %153 : vector<8x1xf32>
      %155 = vector.broadcast %154 : vector<8x1xf32> to vector<8x32xf32>
      %156 = arith.subf %141, %155 : vector<8x32xf32>
      %157 = arith.mulf %156, %156 : vector<8x32xf32>
      %cst_71 = arith.constant dense<0.000000e+00> : vector<8xf32>
      %158 = vector.multi_reduction <add>, %157, %cst_71 [1] : vector<8x32xf32> to vector<8xf32>
      %159 = vector.shape_cast %158 : vector<8xf32> to vector<8x1xf32>
      %cst_72 = arith.constant 3.200000e+01 : f32
      %160 = vector.broadcast %cst_72 : f32 to vector<8x1xf32>
      %161 = arith.divf %159, %160 : vector<8x1xf32>
      %cst_73 = arith.constant 9.99999974E-6 : f32
      %162 = vector.broadcast %cst_73 : f32 to vector<8x1xf32>
      %163 = arith.addf %161, %162 : vector<8x1xf32>
      %164 = math.rsqrt %163 : vector<8x1xf32>
      %165 = vector.broadcast %164 : vector<8x1xf32> to vector<8x32xf32>
      %166 = arith.mulf %156, %165 : vector<8x32xf32>
      %167 = vector.broadcast %149 : vector<1x32xf32> to vector<8x32xf32>
      %168 = arith.mulf %166, %167 : vector<8x32xf32>
      %169 = vector.broadcast %150 : vector<1x32xf32> to vector<8x32xf32>
      %170 = arith.addf %168, %169 : vector<8x32xf32>
      %c0_74 = arith.constant 0 : index
      %c0_75 = arith.constant 0 : index
      %c0_76 = arith.constant 0 : index
      %171 = vector.load %arg18[%c0_74, %c0_75, %c0_76] : memref<1x8x32xf32, #tpu.memory_space<vmem>>, vector<1x8x32xf32>
      %172 = vector.shape_cast %171 : vector<1x8x32xf32> to vector<8x32xf32>
      %173 = vector.shape_cast %170 : vector<8x32xf32> to vector<1x8x32xf32>
      tpu.vector_store %arg18[%c0_74, %c0_75, %c0_76], %173 {strides = array<i32>} : memref<1x8x32xf32, #tpu.memory_space<vmem>>, vector<1x8x32xf32>,
      %c0_77 = arith.constant 0 : index
      %c0_78 = arith.constant 0 : index
      %174 = vector.load %arg21[%c0_77, %c0_78] : memref<8x32xf32, #tpu.memory_space<vmem>>, vector<8x32xf32>
      %c1_i32_79 = arith.constant 1 : i32
      %175 = arith.addi %arg1, %c1_i32_79 : i32
      %176 = arith.index_cast %175 : i32 to index
      %177 = memref.load %arg2[%176] : memref<3xi32, #tpu.memory_space<smem>>
      %178 = arith.sitofp %177 : i32 to f32
      %179 = vector.broadcast %178 : f32 to vector<8x32xf32>
      %180 = arith.mulf %179, %170 : vector<8x32xf32>
      %181 = arith.addf %174, %180 : vector<8x32xf32>
      %cst_80 = arith.constant 5.000000e-01 : f32
      %182 = vector.broadcast %cst_80 : f32 to vector<8x32xf32>
      %183 = arith.mulf %181, %182 : vector<8x32xf32>
      %c0_81 = arith.constant 0 : index
      %c0_82 = arith.constant 0 : index
      %c0_83 = arith.constant 0 : index
      %184 = vector.load %arg19[%c0_81, %c0_82, %c0_83] : memref<1x8x32xf32, #tpu.memory_space<vmem>>, vector<1x8x32xf32>
      %185 = vector.shape_cast %184 : vector<1x8x32xf32> to vector<8x32xf32>
      %186 = vector.shape_cast %183 : vector<8x32xf32> to vector<1x8x32xf32>
      tpu.vector_store %arg19[%c0_81, %c0_82, %c0_83], %186 {strides = array<i32>} : memref<1x8x32xf32, #tpu.memory_space<vmem>>, vector<1x8x32xf32>,
    } else {
    }
    return
  }
  func.func @transform_0(%arg0: i32, %arg1: i32) -> i32 {
    %c0_i32 = arith.constant 0 : i32
    %c0_i32_0 = arith.constant 0 : i32
    return %c0_i32 : i32
  }
  func.func @transform_1(%arg0: i32, %arg1: i32) -> (i32, i32, i32) {
    %c0_i32 = arith.constant 0 : i32
    %c0_i32_0 = arith.constant 0 : i32
    %c0_i32_1 = arith.constant 0 : i32
    return %arg0, %c0_i32, %c0_i32_0 : i32, i32, i32
  }
  func.func @transform_2(%arg0: i32, %arg1: i32) -> (i32, i32, i32) {
    %c0_i32 = arith.constant 0 : i32
    %c0_i32_0 = arith.constant 0 : i32
    %c0_i32_1 = arith.constant 0 : i32
    return %arg1, %c0_i32, %c0_i32_0 : i32, i32, i32
  }
  func.func @transform_3(%arg0: i32, %arg1: i32) -> (i32, i32, i32) {
    %c0_i32 = arith.constant 0 : i32
    %c0_i32_0 = arith.constant 0 : i32
    %c0_i32_1 = arith.constant 0 : i32
    return %arg1, %c0_i32, %c0_i32_0 : i32, i32, i32
  }
  func.func @transform_4(%arg0: i32, %arg1: i32) -> (i32, i32, i32) {
    %c0_i32 = arith.constant 0 : i32
    %c0_i32_0 = arith.constant 0 : i32
    %c0_i32_1 = arith.constant 0 : i32
    return %arg1, %c0_i32, %c0_i32_0 : i32, i32, i32
  }
  func.func @transform_5(%arg0: i32, %arg1: i32) -> (i32, i32, i32) {
    %c0_i32 = arith.constant 0 : i32
    %c0_i32_0 = arith.constant 0 : i32
    %c0_i32_1 = arith.constant 0 : i32
    return %arg1, %c0_i32, %c0_i32_0 : i32, i32, i32
  }
  func.func @transform_6(%arg0: i32, %arg1: i32) -> (i32, i32, i32, i32) {
    %c0_i32 = arith.constant 0 : i32
    %c0_i32_0 = arith.constant 0 : i32
    %c0_i32_1 = arith.constant 0 : i32
    %c0_i32_2 = arith.constant 0 : i32
    return %arg1, %c0_i32, %c0_i32_0, %c0_i32_1 : i32, i32, i32, i32
  }
  func.func @transform_7(%arg0: i32, %arg1: i32) -> (i32, i32, i32) {
    %c0_i32 = arith.constant 0 : i32
    %c0_i32_0 = arith.constant 0 : i32
    %c0_i32_1 = arith.constant 0 : i32
    return %arg1, %c0_i32, %c0_i32_0 : i32, i32, i32
  }
  func.func @transform_8(%arg0: i32, %arg1: i32) -> (i32, i32, i32) {
    %c0_i32 = arith.constant 0 : i32
    %c0_i32_0 = arith.constant 0 : i32
    %c0_i32_1 = arith.constant 0 : i32
    return %arg1, %c0_i32, %c0_i32_0 : i32, i32, i32
  }
  func.func @transform_9(%arg0: i32, %arg1: i32) -> (i32, i32, i32) {
    %c0_i32 = arith.constant 0 : i32
    %c0_i32_0 = arith.constant 0 : i32
    %c0_i32_1 = arith.constant 0 : i32
    return %arg1, %c0_i32, %c0_i32_0 : i32, i32, i32
  }
  func.func @transform_10(%arg0: i32, %arg1: i32) -> (i32, i32, i32) {
    %c0_i32 = arith.constant 0 : i32
    %c0_i32_0 = arith.constant 0 : i32
    %c0_i32_1 = arith.constant 0 : i32
    return %arg1, %c0_i32, %c0_i32_0 : i32, i32, i32
  }
  func.func @transform_11(%arg0: i32, %arg1: i32) -> (i32, i32, i32) {
    %c0_i32 = arith.constant 0 : i32
    %c0_i32_0 = arith.constant 0 : i32
    %c0_i32_1 = arith.constant 0 : i32
    return %arg1, %c0_i32, %c0_i32_0 : i32, i32, i32
  }
  func.func @transform_12(%arg0: i32, %arg1: i32) -> (i32, i32, i32) {
    %c0_i32 = arith.constant 0 : i32
    %c0_i32_0 = arith.constant 0 : i32
    %c0_i32_1 = arith.constant 0 : i32
    return %arg1, %c0_i32, %c0_i32_0 : i32, i32, i32
  }
  func.func @transform_13(%arg0: i32, %arg1: i32) -> (i32, i32, i32) {
    %c0_i32 = arith.constant 0 : i32
    %c0_i32_0 = arith.constant 0 : i32
    %c0_i32_1 = arith.constant 0 : i32
    return %arg1, %c0_i32, %c0_i32_0 : i32, i32, i32
  }
  func.func @transform_14(%arg0: i32, %arg1: i32) -> (i32, i32) {
    %c0_i32 = arith.constant 0 : i32
    %c0_i32_0 = arith.constant 0 : i32
    %c0_i32_1 = arith.constant 0 : i32
    return %c0_i32, %c0_i32_0 : i32, i32
  }
  func.func @transform_15(%arg0: i32, %arg1: i32) -> (i32, i32) {
    %c0_i32 = arith.constant 0 : i32
    %c0_i32_0 = arith.constant 0 : i32
    %c0_i32_1 = arith.constant 0 : i32
    return %c0_i32, %c0_i32_0 : i32, i32
  }
  func.func @transform_16(%arg0: i32, %arg1: i32) -> (i32, i32, i32) {
    %c0_i32 = arith.constant 0 : i32
    %c0_i32_0 = arith.constant 0 : i32
    %c0_i32_1 = arith.constant 0 : i32
    return %arg0, %c0_i32, %c0_i32_0 : i32, i32, i32
  }
  func.func @transform_17(%arg0: i32, %arg1: i32) -> (i32, i32, i32) {
    %c0_i32 = arith.constant 0 : i32
    %c0_i32_0 = arith.constant 0 : i32
    %c0_i32_1 = arith.constant 0 : i32
    return %arg0, %c0_i32, %c0_i32_0 : i32, i32, i32
  }
}

</mosaic_0001>

<llo_original>
// kernel: tpu_custom_call.1
$region0: #{tpu_custom_call.1}
  #allocation0 [shape = 'u32[]', space=smem, size = 0x4, offset = 0x4, fixed_abs, tag = 'smem constant byte address 0x4 - core index']
  #allocation1 [shape = 'u32[144,128]{1,0:T(1,128)}', space=vmem, size = 0x12000, scoped, tag = 'internal scratch']
  #allocation2 [shape = 'f32[8,32]{1,0:T(8,128)}', space=vmem, size = 0x1000, scoped, tag = 'scratch operand']
  #allocation3 [shape = 'f32[8,32]{1,0:T(8,128)}', space=vmem, size = 0x1000, scoped, tag = 'scratch operand']
  %s0 = inlined_call_operand.hbm [shape: s32[3], index: 0, kind: input, shape index: {}]
  %s1 = inlined_call_operand.hbm [shape: f32[2,8,32], index: 1, kind: input, shape index: {}]
  %s2 = inlined_call_operand.vmem [shape: f32[2,1,32], index: 2, kind: input, shape index: {}]
  %s3 = inlined_call_operand.vmem [shape: f32[2,1,32], index: 3, kind: input, shape index: {}]
  %s4 = inlined_call_operand.vmem [shape: bf16[2,32,96], index: 4, kind: input, shape index: {}]
  %s5 = inlined_call_operand.vmem [shape: f32[2,1,96], index: 5, kind: input, shape index: {}]
  %s6 = inlined_call_operand.vmem [shape: bf16[2,4,8,32], index: 6, kind: input, shape index: {}]
  %s7 = inlined_call_operand.vmem [shape: f32[2,1,32], index: 7, kind: input, shape index: {}]
  %s8 = inlined_call_operand.vmem [shape: f32[2,1,32], index: 8, kind: input, shape index: {}]
  %s9 = inlined_call_operand.vmem [shape: f32[2,1,32], index: 9, kind: input, shape index: {}]
  %s10 = inlined_call_operand.vmem [shape: bf16[2,32,64], index: 10, kind: input, shape index: {}]
  %s11 = inlined_call_operand.vmem [shape: f32[2,1,64], index: 11, kind: input, shape index: {}]
  %s12 = inlined_call_operand.vmem [shape: bf16[2,64,32], index: 12, kind: input, shape index: {}]
  %s13 = inlined_call_operand.vmem [shape: f32[2,1,32], index: 13, kind: input, shape index: {}]
  %s14 = inlined_call_operand.vmem [shape: f32[1,32], index: 14, kind: input, shape index: {}]
  %s15 = inlined_call_operand.vmem [shape: f32[1,32], index: 15, kind: input, shape index: {}]
  %s16 = inlined_call_operand.hbm [shape: f32[2,8,32], index: 16, kind: output, shape index: {0}]
  %s17 = inlined_call_operand.hbm [shape: f32[2,8,32], index: 17, kind: output, shape index: {1}]
  %18 = xla_tuple %s16, %s17
  %s19 = sld [smem:[#allocation0]]
  $region125: #{tpu_custom_call.1} parent=0
    _
  %s21 = ssub.s32 1, %s19
  %s22 = scalar_select 0, %s21, %s19
  $region1: #{tpu_custom_call.1} parent=0
    #allocation4 [shape = 'u8[512]{0}', space=smem, size = 0x200, scoped, tag = 'input window, operand 0, single buffered']
    #allocation5 [shape = 's32[2]{0}', space=sflag, size = 0x8, scoped, tag = 'scoped memory for tpu_custom_call.1']
    #allocation6 [shape = 's32[2]{0}', space=sflag, size = 0x8, scoped, tag = 'scoped memory for tpu_custom_call.1']
    #allocation7 [shape = 's32[2]{0}', space=sflag, size = 0x8, scoped, tag = 'scoped memory for tpu_custom_call.1']
    #allocation8 [shape = 'u8[8192]{0}', space=vmem, size = 0x2000, scoped, tag = 'input window, operand 1']
    #allocation9 [shape = 'u8[8192]{0}', space=vmem, size = 0x2000, scoped, tag = 'output window, operand 0']
    #allocation10 [shape = 'u8[8192]{0}', space=vmem, size = 0x2000, scoped, tag = 'output window, operand 1']
    #allocation11 [shape = 's32[2]{0}', space=sflag, size = 0x8, scoped, tag = 'scoped memory for tpu_custom_call.1']
    %23 = vsyncpa [#allocation7], 0
    %24 = vsyncpa [#allocation5], 0
    %s25 = scalar_lea.sflag [#allocation5], 1
    %26 = vsyncpa %s25, 0
    %27 = vsyncpa [#allocation6], 0
    %s28 = scalar_lea.sflag [#allocation6], 1
    %29 = vsyncpa %s28, 0
    %30 = vsyncpa [#allocation11], 0
    %s31 = scalar_lea.sflag [#allocation11], 1
    %32 = vsyncpa %s31, 0
    loop: start=0, step=1, limit=6
    $region2: #{tpu_custom_call.1} parent=1 // loop_pre_header
      _
    $region3: #{tpu_custom_call.1} parent=1 // loop_header
      %s34 = sphi 0, %s38
      %p35 = scmp.ge.s32.totalorder %s34, 6
      %s41 = sphi 0, %s53
      %s42 = sphi 0, %s49
      %s43 = sphi 0, %s41
      %s44 = sphi 0, %s42
      %s45 = sphi 0, %s43
      %s46 = sphi 0, %s44
      %s54 = sphi 0, %s54
      %s56 = sphi 0, %s54
      %s57 = sphi 0, %s56
      %s71 = sphi 0, %s57
      %s77 = sphi 0, %s79
      %s80 = sphi 0, %s77
      %s81 = sphi 0, %s80
      %s97 = sphi 0, %s81
      %s103 = sphi 0, %s105
      %s106 = sphi 0, %s103
      %s107 = sphi 0, %s106
      %s123 = sphi 0, %s107
      %s129 = sphi 0, %s131
      %s132 = sphi 0, %s129
      %s133 = sphi 0, %s132
      %s149 = sphi 0, %s133
      %s155 = sphi 0, %s157
      %s158 = sphi 0, %s155
      %s159 = sphi 0, %s158
      %s175 = sphi 0, %s159
      %s181 = sphi 0, %s183
      %s184 = sphi 0, %s181
      %s185 = sphi 0, %s184
      %s201 = sphi 0, %s185
      %s207 = sphi 0, %s209
      %s210 = sphi 0, %s207
      %s211 = sphi 0, %s210
      %s227 = sphi 0, %s211
      %s233 = sphi 0, %s235
      %s236 = sphi 0, %s233
      %s237 = sphi 0, %s236
      %s253 = sphi 0, %s237
      %s259 = sphi 0, %s261
      %s262 = sphi 0, %s259
      %s263 = sphi 0, %s262
      %s279 = sphi 0, %s263
      %s285 = sphi 0, %s287
      %s288 = sphi 0, %s285
      %s289 = sphi 0, %s288
      %s305 = sphi 0, %s289
      %s311 = sphi 0, %s313
      %s314 = sphi 0, %s311
      %s315 = sphi 0, %s314
      %s331 = sphi 0, %s315
      %s337 = sphi 0, %s339
      %s340 = sphi 0, %s337
      %s341 = sphi 0, %s340
      %s357 = sphi 0, %s341
      %s363 = sphi 0, %s365
      %s366 = sphi 0, %s363
      %s367 = sphi 0, %s366
      %s383 = sphi 0, %s367
      %s389 = sphi 0, %s391
      %s392 = sphi 0, %s389
      %s393 = sphi 0, %s392
      %s409 = sphi 0, %s393
      %s413 = sphi 0, %s413
      %s415 = sphi 0, %s413
      %s416 = sphi 0, %s415
      %s430 = sphi 0, %s416
      %s434 = sphi 0, %s434
      %s436 = sphi 0, %s434
      %s437 = sphi 0, %s436
      %s451 = sphi 0, %s437
      %s457 = sphi 0, %s459
      %s460 = sphi 0, %s457
      %s461 = sphi 0, %s460
      %s477 = sphi 0, %s461
      %s483 = sphi 0, %s485
      %s486 = sphi 0, %s483
      %s487 = sphi 0, %s486
      %s503 = sphi 0, %s487
    $region4: #{tpu_custom_call.1} parent=1 // loop_header_branch
      %37 = sbr.rel (%p35) target = $region8
    $region5: #{tpu_custom_call.1} parent=1 // loop_body
      %s39 = ssub.s32 %s34, 1
      %s40 = ssub.s32 %s34, 2
      %s47 = sadd.s32 1, %s42
      %p48 = scmp.ge.s32.totalorder %s47, 2
      %s49 = scalar_select %p48, 0, %s47
      %s50 = sadd.s32 1, %s41
      %s51 = scalar_select %p48, %s50, %s41
      %p52 = scmp.ge.s32.totalorder %s51, 2
      %s53 = scalar_select %p52, 0, %s51
      %s55 = sadd.s32 %s54, 1
      %p58 = scmp.eq.s32.totalorder %s34, 3
      %p59 = scmp.ne.s32.totalorder %s54, %s56
      %p60 = scmp.eq.s32.totalorder %s34, 0
      %p61 = por %p59, %p60
      %p62 = scmp.ne.s32.totalorder %s54, %s56
      %p63 = scmp.eq.s32.totalorder %s39, 3
      %p64 = por %p62, %p63
      %p65 = scmp.ne.s32.totalorder %s56, %s57
      %p66 = scmp.eq.s32.totalorder %s39, 0
      %p67 = por %p65, %p66
      %p68 = scmp.ne.s32.totalorder %s56, %s57
      %p69 = scmp.eq.s32.totalorder %s40, 3
      %p70 = por %p68, %p69
      %p72 = scmp.ne.s32.totalorder %s57, %s71
      %p73 = scmp.eq.s32.totalorder %s40, 0
      %p74 = por %p72, %p73
      %s75 = ssub.s32 %s41, %s53
      %p76 = scmp.eq.s32.totalorder %s75, 0
      %s78 = sadd.s32 %s77, 1
      %s79 = scalar_select %p76, %s77, %s78
      %p82 = pneg %p76
      %p83 = scmp.eq.s32.totalorder %s34, 3
      %p84 = por %p82, %p83
      %p85 = scmp.ne.s32.totalorder %s77, %s80
      %p86 = scmp.eq.s32.totalorder %s34, 0
      %p87 = por %p85, %p86
      %p88 = scmp.ne.s32.totalorder %s77, %s80
      %p89 = scmp.eq.s32.totalorder %s39, 3
      %p90 = por %p88, %p89
      %p91 = scmp.ne.s32.totalorder %s80, %s81
      %p92 = scmp.eq.s32.totalorder %s39, 0
      %p93 = por %p91, %p92
      %p94 = scmp.ne.s32.totalorder %s80, %s81
      %p95 = scmp.eq.s32.totalorder %s40, 3
      %p96 = por %p94, %p95
      %p98 = scmp.ne.s32.totalorder %s81, %s97
      %p99 = scmp.eq.s32.totalorder %s40, 0
      %p100 = por %p98, %p99
      %s101 = ssub.s32 %s42, %s49
      %p102 = scmp.eq.s32.totalorder %s101, 0
      %s104 = sadd.s32 %s103, 1
      %s105 = scalar_select %p102, %s103, %s104
      %p108 = pneg %p102
      %p109 = scmp.eq.s32.totalorder %s34, 3
      %p110 = por %p108, %p109
      %p111 = scmp.ne.s32.totalorder %s103, %s106
      %p112 = scmp.eq.s32.totalorder %s34, 0
      %p113 = por %p111, %p112
      %p114 = scmp.ne.s32.totalorder %s103, %s106
      %p115 = scmp.eq.s32.totalorder %s39, 3
      %p116 = por %p114, %p115
      %p117 = scmp.ne.s32.totalorder %s106, %s107
      %p118 = scmp.eq.s32.totalorder %s39, 0
      %p119 = por %p117, %p118
      %p120 = scmp.ne.s32.totalorder %s106, %s107
      %p121 = scmp.eq.s32.totalorder %s40, 3
      %p122 = por %p120, %p121
      %p124 = scmp.ne.s32.totalorder %s107, %s123
      %p125 = scmp.eq.s32.totalorder %s40, 0
      %p126 = por %p124, %p125
      %s127 = ssub.s32 %s42, %s49
      %p128 = scmp.eq.s32.totalorder %s127, 0
      %s130 = sadd.s32 %s129, 1
      %s131 = scalar_select %p128, %s129, %s130
      %p134 = pneg %p128
      %p135 = scmp.eq.s32.totalorder %s34, 3
      %p136 = por %p134, %p135
      %p137 = scmp.ne.s32.totalorder %s129, %s132
      %p138 = scmp.eq.s32.totalorder %s34, 0
      %p139 = por %p137, %p138
      %p140 = scmp.ne.s32.totalorder %s129, %s132
      %p141 = scmp.eq.s32.totalorder %s39, 3
      %p142 = por %p140, %p141
      %p143 = scmp.ne.s32.totalorder %s132, %s133
      %p144 = scmp.eq.s32.totalorder %s39, 0
      %p145 = por %p143, %p144
      %p146 = scmp.ne.s32.totalorder %s132, %s133
      %p147 = scmp.eq.s32.totalorder %s40, 3
      %p148 = por %p146, %p147
      %p150 = scmp.ne.s32.totalorder %s133, %s149
      %p151 = scmp.eq.s32.totalorder %s40, 0
      %p152 = por %p150, %p151
      %s153 = ssub.s32 %s42, %s49
      %p154 = scmp.eq.s32.totalorder %s153, 0
      %s156 = sadd.s32 %s155, 1
      %s157 = scalar_select %p154, %s155, %s156
      %p160 = pneg %p154
      %p161 = scmp.eq.s32.totalorder %s34, 3
      %p162 = por %p160, %p161
      %p163 = scmp.ne.s32.totalorder %s155, %s158
      %p164 = scmp.eq.s32.totalorder %s34, 0
      %p165 = por %p163, %p164
      %p166 = scmp.ne.s32.totalorder %s155, %s158
      %p167 = scmp.eq.s32.totalorder %s39, 3
      %p168 = por %p166, %p167
      %p169 = scmp.ne.s32.totalorder %s158, %s159
      %p170 = scmp.eq.s32.totalorder %s39, 0
      %p171 = por %p169, %p170
      %p172 = scmp.ne.s32.totalorder %s158, %s159
      %p173 = scmp.eq.s32.totalorder %s40, 3
      %p174 = por %p172, %p173
      %p176 = scmp.ne.s32.totalorder %s159, %s175
      %p177 = scmp.eq.s32.totalorder %s40, 0
      %p178 = por %p176, %p177
      %s179 = ssub.s32 %s42, %s49
      %p180 = scmp.eq.s32.totalorder %s179, 0
      %s182 = sadd.s32 %s181, 1
      %s183 = scalar_select %p180, %s181, %s182
      %p186 = pneg %p180
      %p187 = scmp.eq.s32.totalorder %s34, 3
      %p188 = por %p186, %p187
      %p189 = scmp.ne.s32.totalorder %s181, %s184
      %p190 = scmp.eq.s32.totalorder %s34, 0
      %p191 = por %p189, %p190
      %p192 = scmp.ne.s32.totalorder %s181, %s184
      %p193 = scmp.eq.s32.totalorder %s39, 3
      %p194 = por %p192, %p193
      %p195 = scmp.ne.s32.totalorder %s184, %s185
      %p196 = scmp.eq.s32.totalorder %s39, 0
      %p197 = por %p195, %p196
      %p198 = scmp.ne.s32.totalorder %s184, %s185
      %p199 = scmp.eq.s32.totalorder %s40, 3
      %p200 = por %p198, %p199
      %p202 = scmp.ne.s32.totalorder %s185, %s201
      %p203 = scmp.eq.s32.totalorder %s40, 0
      %p204 = por %p202, %p203
      %s205 = ssub.s32 %s42, %s49
      %p206 = scmp.eq.s32.totalorder %s205, 0
      %s208 = sadd.s32 %s207, 1
      %s209 = scalar_select %p206, %s207, %s208
      %p212 = pneg %p206
      %p213 = scmp.eq.s32.totalorder %s34, 3
      %p214 = por %p212, %p213
      %p215 = scmp.ne.s32.totalorder %s207, %s210
      %p216 = scmp.eq.s32.totalorder %s34, 0
      %p217 = por %p215, %p216
      %p218 = scmp.ne.s32.totalorder %s207, %s210
      %p219 = scmp.eq.s32.totalorder %s39, 3
      %p220 = por %p218, %p219
      %p221 = scmp.ne.s32.totalorder %s210, %s211
      %p222 = scmp.eq.s32.totalorder %s39, 0
      %p223 = por %p221, %p222
      %p224 = scmp.ne.s32.totalorder %s210, %s211
      %p225 = scmp.eq.s32.totalorder %s40, 3
      %p226 = por %p224, %p225
      %p228 = scmp.ne.s32.totalorder %s211, %s227
      %p229 = scmp.eq.s32.totalorder %s40, 0
      %p230 = por %p228, %p229
      %s231 = ssub.s32 %s42, %s49
      %p232 = scmp.eq.s32.totalorder %s231, 0
      %s234 = sadd.s32 %s233, 1
      %s235 = scalar_select %p232, %s233, %s234
      %p238 = pneg %p232
      %p239 = scmp.eq.s32.totalorder %s34, 3
      %p240 = por %p238, %p239
      %p241 = scmp.ne.s32.totalorder %s233, %s236
      %p242 = scmp.eq.s32.totalorder %s34, 0
      %p243 = por %p241, %p242
      %p244 = scmp.ne.s32.totalorder %s233, %s236
      %p245 = scmp.eq.s32.totalorder %s39, 3
      %p246 = por %p244, %p245
      %p247 = scmp.ne.s32.totalorder %s236, %s237
      %p248 = scmp.eq.s32.totalorder %s39, 0
      %p249 = por %p247, %p248
      %p250 = scmp.ne.s32.totalorder %s236, %s237
      %p251 = scmp.eq.s32.totalorder %s40, 3
      %p252 = por %p250, %p251
      %p254 = scmp.ne.s32.totalorder %s237, %s253
      %p255 = scmp.eq.s32.totalorder %s40, 0
      %p256 = por %p254, %p255
      %s257 = ssub.s32 %s42, %s49
      %p258 = scmp.eq.s32.totalorder %s257, 0
      %s260 = sadd.s32 %s259, 1
      %s261 = scalar_select %p258, %s259, %s260
      %p264 = pneg %p258
      %p265 = scmp.eq.s32.totalorder %s34, 3
      %p266 = por %p264, %p265
      %p267 = scmp.ne.s32.totalorder %s259, %s262
      %p268 = scmp.eq.s32.totalorder %s34, 0
      %p269 = por %p267, %p268
      %p270 = scmp.ne.s32.totalorder %s259, %s262
      %p271 = scmp.eq.s32.totalorder %s39, 3
      %p272 = por %p270, %p271
      %p273 = scmp.ne.s32.totalorder %s262, %s263
      %p274 = scmp.eq.s32.totalorder %s39, 0
      %p275 = por %p273, %p274
      %p276 = scmp.ne.s32.totalorder %s262, %s263
      %p277 = scmp.eq.s32.totalorder %s40, 3
      %p278 = por %p276, %p277
      %p280 = scmp.ne.s32.totalorder %s263, %s279
      %p281 = scmp.eq.s32.totalorder %s40, 0
      %p282 = por %p280, %p281
      %s283 = ssub.s32 %s42, %s49
      %p284 = scmp.eq.s32.totalorder %s283, 0
      %s286 = sadd.s32 %s285, 1
      %s287 = scalar_select %p284, %s285, %s286
      %p290 = pneg %p284
      %p291 = scmp.eq.s32.totalorder %s34, 3
      %p292 = por %p290, %p291
      %p293 = scmp.ne.s32.totalorder %s285, %s288
      %p294 = scmp.eq.s32.totalorder %s34, 0
      %p295 = por %p293, %p294
      %p296 = scmp.ne.s32.totalorder %s285, %s288
      %p297 = scmp.eq.s32.totalorder %s39, 3
      %p298 = por %p296, %p297
      %p299 = scmp.ne.s32.totalorder %s288, %s289
      %p300 = scmp.eq.s32.totalorder %s39, 0
      %p301 = por %p299, %p300
      %p302 = scmp.ne.s32.totalorder %s288, %s289
      %p303 = scmp.eq.s32.totalorder %s40, 3
      %p304 = por %p302, %p303
      %p306 = scmp.ne.s32.totalorder %s289, %s305
      %p307 = scmp.eq.s32.totalorder %s40, 0
      %p308 = por %p306, %p307
      %s309 = ssub.s32 %s42, %s49
      %p310 = scmp.eq.s32.totalorder %s309, 0
      %s312 = sadd.s32 %s311, 1
      %s313 = scalar_select %p310, %s311, %s312
      %p316 = pneg %p310
      %p317 = scmp.eq.s32.totalorder %s34, 3
      %p318 = por %p316, %p317
      %p319 = scmp.ne.s32.totalorder %s311, %s314
      %p320 = scmp.eq.s32.totalorder %s34, 0
      %p321 = por %p319, %p320
      %p322 = scmp.ne.s32.totalorder %s311, %s314
      %p323 = scmp.eq.s32.totalorder %s39, 3
      %p324 = por %p322, %p323
      %p325 = scmp.ne.s32.totalorder %s314, %s315
      %p326 = scmp.eq.s32.totalorder %s39, 0
      %p327 = por %p325, %p326
      %p328 = scmp.ne.s32.totalorder %s314, %s315
      %p329 = scmp.eq.s32.totalorder %s40, 3
      %p330 = por %p328, %p329
      %p332 = scmp.ne.s32.totalorder %s315, %s331
      %p333 = scmp.eq.s32.totalorder %s40, 0
      %p334 = por %p332, %p333
      %s335 = ssub.s32 %s42, %s49
      %p336 = scmp.eq.s32.totalorder %s335, 0
      %s338 = sadd.s32 %s337, 1
      %s339 = scalar_select %p336, %s337, %s338
      %p342 = pneg %p336
      %p343 = scmp.eq.s32.totalorder %s34, 3
      %p344 = por %p342, %p343
      %p345 = scmp.ne.s32.totalorder %s337, %s340
      %p346 = scmp.eq.s32.totalorder %s34, 0
      %p347 = por %p345, %p346
      %p348 = scmp.ne.s32.totalorder %s337, %s340
      %p349 = scmp.eq.s32.totalorder %s39, 3
      %p350 = por %p348, %p349
      %p351 = scmp.ne.s32.totalorder %s340, %s341
      %p352 = scmp.eq.s32.totalorder %s39, 0
      %p353 = por %p351, %p352
      %p354 = scmp.ne.s32.totalorder %s340, %s341
      %p355 = scmp.eq.s32.totalorder %s40, 3
      %p356 = por %p354, %p355
      %p358 = scmp.ne.s32.totalorder %s341, %s357
      %p359 = scmp.eq.s32.totalorder %s40, 0
      %p360 = por %p358, %p359
      %s361 = ssub.s32 %s42, %s49
      %p362 = scmp.eq.s32.totalorder %s361, 0
      %s364 = sadd.s32 %s363, 1
      %s365 = scalar_select %p362, %s363, %s364
      %p368 = pneg %p362
      %p369 = scmp.eq.s32.totalorder %s34, 3
      %p370 = por %p368, %p369
      %p371 = scmp.ne.s32.totalorder %s363, %s366
      %p372 = scmp.eq.s32.totalorder %s34, 0
      %p373 = por %p371, %p372
      %p374 = scmp.ne.s32.totalorder %s363, %s366
      %p375 = scmp.eq.s32.totalorder %s39, 3
      %p376 = por %p374, %p375
      %p377 = scmp.ne.s32.totalorder %s366, %s367
      %p378 = scmp.eq.s32.totalorder %s39, 0
      %p379 = por %p377, %p378
      %p380 = scmp.ne.s32.totalorder %s366, %s367
      %p381 = scmp.eq.s32.totalorder %s40, 3
      %p382 = por %p380, %p381
      %p384 = scmp.ne.s32.totalorder %s367, %s383
      %p385 = scmp.eq.s32.totalorder %s40, 0
      %p386 = por %p384, %p385
      %s387 = ssub.s32 %s42, %s49
      %p388 = scmp.eq.s32.totalorder %s387, 0
      %s390 = sadd.s32 %s389, 1
      %s391 = scalar_select %p388, %s389, %s390
      %p394 = pneg %p388
      %p395 = scmp.eq.s32.totalorder %s34, 3
      %p396 = por %p394, %p395
      %p397 = scmp.ne.s32.totalorder %s389, %s392
      %p398 = scmp.eq.s32.totalorder %s34, 0
      %p399 = por %p397, %p398
      %p400 = scmp.ne.s32.totalorder %s389, %s392
      %p401 = scmp.eq.s32.totalorder %s39, 3
      %p402 = por %p400, %p401
      %p403 = scmp.ne.s32.totalorder %s392, %s393
      %p404 = scmp.eq.s32.totalorder %s39, 0
      %p405 = por %p403, %p404
      %p406 = scmp.ne.s32.totalorder %s392, %s393
      %p407 = scmp.eq.s32.totalorder %s40, 3
      %p408 = por %p406, %p407
      %p410 = scmp.ne.s32.totalorder %s393, %s409
      %p411 = scmp.eq.s32.totalorder %s40, 0
      %p412 = por %p410, %p411
      %s414 = sadd.s32 %s413, 1
      %p417 = scmp.eq.s32.totalorder %s34, 3
      %p418 = scmp.ne.s32.totalorder %s413, %s415
      %p419 = scmp.eq.s32.totalorder %s34, 0
      %p420 = por %p418, %p419
      %p421 = scmp.ne.s32.totalorder %s413, %s415
      %p422 = scmp.eq.s32.totalorder %s39, 3
      %p423 = por %p421, %p422
      %p424 = scmp.ne.s32.totalorder %s415, %s416
      %p425 = scmp.eq.s32.totalorder %s39, 0
      %p426 = por %p424, %p425
      %p427 = scmp.ne.s32.totalorder %s415, %s416
      %p428 = scmp.eq.s32.totalorder %s40, 3
      %p429 = por %p427, %p428
      %p431 = scmp.ne.s32.totalorder %s416, %s430
      %p432 = scmp.eq.s32.totalorder %s40, 0
      %p433 = por %p431, %p432
      %s435 = sadd.s32 %s434, 1
      %p438 = scmp.eq.s32.totalorder %s34, 3
      %p439 = scmp.ne.s32.totalorder %s434, %s436
      %p440 = scmp.eq.s32.totalorder %s34, 0
      %p441 = por %p439, %p440
      %p442 = scmp.ne.s32.totalorder %s434, %s436
      %p443 = scmp.eq.s32.totalorder %s39, 3
      %p444 = por %p442, %p443
      %p445 = scmp.ne.s32.totalorder %s436, %s437
      %p446 = scmp.eq.s32.totalorder %s39, 0
      %p447 = por %p445, %p446
      %p448 = scmp.ne.s32.totalorder %s436, %s437
      %p449 = scmp.eq.s32.totalorder %s40, 3
      %p450 = por %p448, %p449
      %p452 = scmp.ne.s32.totalorder %s437, %s451
      %p453 = scmp.eq.s32.totalorder %s40, 0
      %p454 = por %p452, %p453
      %s455 = ssub.s32 %s41, %s53
      %p456 = scmp.eq.s32.totalorder %s455, 0
      %s458 = sadd.s32 %s457, 1
      %s459 = scalar_select %p456, %s457, %s458
      %p462 = pneg %p456
      %p463 = scmp.eq.s32.totalorder %s34, 3
      %p464 = por %p462, %p463
      %p465 = scmp.ne.s32.totalorder %s457, %s460
      %p466 = scmp.eq.s32.totalorder %s34, 0
      %p467 = por %p465, %p466
      %p468 = scmp.ne.s32.totalorder %s457, %s460
      %p469 = scmp.eq.s32.totalorder %s39, 3
      %p470 = por %p468, %p469
      %p471 = scmp.ne.s32.totalorder %s460, %s461
      %p472 = scmp.eq.s32.totalorder %s39, 0
      %p473 = por %p471, %p472
      %p474 = scmp.ne.s32.totalorder %s460, %s461
      %p475 = scmp.eq.s32.totalorder %s40, 3
      %p476 = por %p474, %p475
      %p478 = scmp.ne.s32.totalorder %s461, %s477
      %p479 = scmp.eq.s32.totalorder %s40, 0
      %p480 = por %p478, %p479
      %s481 = ssub.s32 %s41, %s53
      %p482 = scmp.eq.s32.totalorder %s481, 0
      %s484 = sadd.s32 %s483, 1
      %s485 = scalar_select %p482, %s483, %s484
      %p488 = pneg %p482
      %p489 = scmp.eq.s32.totalorder %s34, 3
      %p490 = por %p488, %p489
      %p491 = scmp.ne.s32.totalorder %s483, %s486
      %p492 = scmp.eq.s32.totalorder %s34, 0
      %p493 = por %p491, %p492
      %p494 = scmp.ne.s32.totalorder %s483, %s486
      %p495 = scmp.eq.s32.totalorder %s39, 3
      %p496 = por %p494, %p495
      %p497 = scmp.ne.s32.totalorder %s486, %s487
      %p498 = scmp.eq.s32.totalorder %s39, 0
      %p499 = por %p497, %p498
      %p500 = scmp.ne.s32.totalorder %s486, %s487
      %p501 = scmp.eq.s32.totalorder %s40, 3
      %p502 = por %p500, %p501
      %p504 = scmp.ne.s32.totalorder %s487, %s503
      %p505 = scmp.eq.s32.totalorder %s40, 0
      %p506 = por %p504, %p505
      %p507 = scmp.le.s32.totalorder 1, %s34
      %p508 = scmp.lt.s32.totalorder %s34, 5
      %p509 = pnand %p507, %p508
      %p510 = pneg %p509
      // Predicated region
      $region9: #{tpu_custom_call.1} parent=5 // pred_check
        _
      $region10: #{tpu_custom_call.1} parent=5 // pred_check_branch
        %512 = sbr.rel (%p509) target = $region12
      $region11: #{tpu_custom_call.1} parent=5 // pred_region
        %s513 = ssub.s32 %s34, 1
        // Predicated region
        $region13: #{tpu_custom_call.1} parent=11 // pred_check
          %p514 = pneg %p67
        $region14: #{tpu_custom_call.1} parent=11 // pred_check_branch
          %516 = sbr.rel (%p514) target = $region16
        $region15: #{tpu_custom_call.1} parent=11 // pred_region
          %s518 = ssub.s32 16, 16
          %519 = vsyncadd [#allocation7], %s518
          %522 = dma.hbm_to_smem %s0, 16, [#allocation4], [#allocation7]
        $region16: #{tpu_custom_call.1} parent=11 // pred_fallthru
          _
        // Predicated region
        $region17: #{tpu_custom_call.1} parent=11 // pred_check
          %p523 = pneg %p426
        $region18: #{tpu_custom_call.1} parent=11 // pred_check_branch
          %525 = sbr.rel (%p523) target = $region20
        $region19: #{tpu_custom_call.1} parent=11 // pred_region
          _
        $region20: #{tpu_custom_call.1} parent=11 // pred_fallthru
          _
        // Predicated region
        $region21: #{tpu_custom_call.1} parent=11 // pred_check
          %p526 = pneg %p447
        $region22: #{tpu_custom_call.1} parent=11 // pred_check_branch
          %528 = sbr.rel (%p526) target = $region24
        $region23: #{tpu_custom_call.1} parent=11 // pred_region
          _
        $region24: #{tpu_custom_call.1} parent=11 // pred_fallthru
          _
      $region12: #{tpu_custom_call.1} parent=5 // pred_fallthru
        _
      %p529 = scmp.lt.s32.totalorder %s34, 4
      // Predicated region
      $region25: #{tpu_custom_call.1} parent=5 // pred_check
        %p530 = pneg %p529
      $region26: #{tpu_custom_call.1} parent=5 // pred_check_branch
        %532 = sbr.rel (%p530) target = $region28
      $region27: #{tpu_custom_call.1} parent=5 // pred_region
        // Predicated region
        $region29: #{tpu_custom_call.1} parent=27 // pred_check
          %p533 = pneg %p87
        $region30: #{tpu_custom_call.1} parent=27 // pred_check_branch
          %535 = sbr.rel (%p533) target = $region32
        $region31: #{tpu_custom_call.1} parent=27 // pred_region
          %s536 = sand.u32 %s77, 1
          %s537 = scalar_lea.sflag [#allocation5], %s536
          %s538 = sand.u32 %s77, 1
          %s539 = smul.addr %s538, 8
          %s540 = scalar_lea.vmem [#allocation8], %s539
          %s542 = ssub.s32 128, 128
          %543 = vsyncadd %s537, %s542
          %s544 = smul.addr %s41, 128
          %s545 = scalar_lea.hbm %s1, %s544
          %s547 = sshll.u32 %s540, 4
          %s548 = int_to_ptr.vmem [resolvable:$true] %s547
          %550 = dma.hbm_to_vmem [thread:$0]  %s545, 128, %s548, %s537
        $region32: #{tpu_custom_call.1} parent=27 // pred_fallthru
          _
        // Predicated region
        $region33: #{tpu_custom_call.1} parent=27 // pred_check
          %p551 = pneg %p113
        $region34: #{tpu_custom_call.1} parent=27 // pred_check_branch
          %553 = sbr.rel (%p551) target = $region36
        $region35: #{tpu_custom_call.1} parent=27 // pred_region
          %p554 = scmp.lt.s32.totalorder %s42, 1
          %s555 = scalar_select %p554, %s42, 1
          %s556 = scalar_lea.vmem %s2, %s555
        $region36: #{tpu_custom_call.1} parent=27 // pred_fallthru
          _
        // Predicated region
        $region37: #{tpu_custom_call.1} parent=27 // pred_check
          %p557 = pneg %p139
        $region38: #{tpu_custom_call.1} parent=27 // pred_check_branch
          %559 = sbr.rel (%p557) target = $region40
        $region39: #{tpu_custom_call.1} parent=27 // pred_region
          %p560 = scmp.lt.s32.totalorder %s42, 1
          %s561 = scalar_select %p560, %s42, 1
          %s562 = scalar_lea.vmem %s3, %s561
        $region40: #{tpu_custom_call.1} parent=27 // pred_fallthru
          _
        // Predicated region
        $region41: #{tpu_custom_call.1} parent=27 // pred_check
          %p563 = pneg %p165
        $region42: #{tpu_custom_call.1} parent=27 // pred_check_branch
          %565 = sbr.rel (%p563) target = $region44
        $region43: #{tpu_custom_call.1} parent=27 // pred_region
          %p566 = scmp.lt.s32.totalorder %s42, 1
          %s567 = scalar_select %p566, %s42, 1
          %s568 = smul.addr %s567, 4
          %s569 = smul.addr %s568, 4
          %s570 = scalar_lea.vmem %s4, %s569
        $region44: #{tpu_custom_call.1} parent=27 // pred_fallthru
          _
        // Predicated region
        $region45: #{tpu_custom_call.1} parent=27 // pred_check
          %p571 = pneg %p191
        $region46: #{tpu_custom_call.1} parent=27 // pred_check_branch
          %573 = sbr.rel (%p571) target = $region48
        $region47: #{tpu_custom_call.1} parent=27 // pred_region
          %p574 = scmp.lt.s32.totalorder %s42, 1
          %s575 = scalar_select %p574, %s42, 1
          %s576 = scalar_lea.vmem %s5, %s575
        $region48: #{tpu_custom_call.1} parent=27 // pred_fallthru
          _
        // Predicated region
        $region49: #{tpu_custom_call.1} parent=27 // pred_check
          %p577 = pneg %p217
        $region50: #{tpu_custom_call.1} parent=27 // pred_check_branch
          %579 = sbr.rel (%p577) target = $region52
        $region51: #{tpu_custom_call.1} parent=27 // pred_region
          %p580 = scmp.lt.s32.totalorder %s42, 1
          %s581 = scalar_select %p580, %s42, 1
          %s582 = smul.addr %s581, 4
          %s583 = smul.addr %s582, 4
          %s584 = scalar_lea.vmem %s6, %s583
        $region52: #{tpu_custom_call.1} parent=27 // pred_fallthru
          _
        // Predicated region
        $region53: #{tpu_custom_call.1} parent=27 // pred_check
          %p585 = pneg %p243
        $region54: #{tpu_custom_call.1} parent=27 // pred_check_branch
          %587 = sbr.rel (%p585) target = $region56
        $region55: #{tpu_custom_call.1} parent=27 // pred_region
          %p588 = scmp.lt.s32.totalorder %s42, 1
          %s589 = scalar_select %p588, %s42, 1
          %s590 = scalar_lea.vmem %s7, %s589
        $region56: #{tpu_custom_call.1} parent=27 // pred_fallthru
          _
        // Predicated region
        $region57: #{tpu_custom_call.1} parent=27 // pred_check
          %p591 = pneg %p269
        $region58: #{tpu_custom_call.1} parent=27 // pred_check_branch
          %593 = sbr.rel (%p591) target = $region60
        $region59: #{tpu_custom_call.1} parent=27 // pred_region
          %p594 = scmp.lt.s32.totalorder %s42, 1
          %s595 = scalar_select %p594, %s42, 1
          %s596 = scalar_lea.vmem %s8, %s595
        $region60: #{tpu_custom_call.1} parent=27 // pred_fallthru
          _
        // Predicated region
        $region61: #{tpu_custom_call.1} parent=27 // pred_check
          %p597 = pneg %p295
        $region62: #{tpu_custom_call.1} parent=27 // pred_check_branch
          %599 = sbr.rel (%p597) target = $region64
        $region63: #{tpu_custom_call.1} parent=27 // pred_region
          %p600 = scmp.lt.s32.totalorder %s42, 1
          %s601 = scalar_select %p600, %s42, 1
          %s602 = scalar_lea.vmem %s9, %s601
        $region64: #{tpu_custom_call.1} parent=27 // pred_fallthru
          _
        // Predicated region
        $region65: #{tpu_custom_call.1} parent=27 // pred_check
          %p603 = pneg %p321
        $region66: #{tpu_custom_call.1} parent=27 // pred_check_branch
          %605 = sbr.rel (%p603) target = $region68
        $region67: #{tpu_custom_call.1} parent=27 // pred_region
          %p606 = scmp.lt.s32.totalorder %s42, 1
          %s607 = scalar_select %p606, %s42, 1
          %s608 = smul.addr %s607, 4
          %s609 = smul.addr %s608, 4
          %s610 = scalar_lea.vmem %s10, %s609
        $region68: #{tpu_custom_call.1} parent=27 // pred_fallthru
          _
        // Predicated region
        $region69: #{tpu_custom_call.1} parent=27 // pred_check
          %p611 = pneg %p347
        $region70: #{tpu_custom_call.1} parent=27 // pred_check_branch
          %613 = sbr.rel (%p611) target = $region72
        $region71: #{tpu_custom_call.1} parent=27 // pred_region
          %p614 = scmp.lt.s32.totalorder %s42, 1
          %s615 = scalar_select %p614, %s42, 1
          %s616 = scalar_lea.vmem %s11, %s615
        $region72: #{tpu_custom_call.1} parent=27 // pred_fallthru
          _
        // Predicated region
        $region73: #{tpu_custom_call.1} parent=27 // pred_check
          %p617 = pneg %p373
        $region74: #{tpu_custom_call.1} parent=27 // pred_check_branch
          %619 = sbr.rel (%p617) target = $region76
        $region75: #{tpu_custom_call.1} parent=27 // pred_region
          %p620 = scmp.lt.s32.totalorder %s42, 1
          %s621 = scalar_select %p620, %s42, 1
          %s622 = smul.addr %s621, 8
          %s623 = smul.addr %s622, 4
          %s624 = scalar_lea.vmem %s12, %s623
        $region76: #{tpu_custom_call.1} parent=27 // pred_fallthru
          _
        // Predicated region
        $region77: #{tpu_custom_call.1} parent=27 // pred_check
          %p625 = pneg %p399
        $region78: #{tpu_custom_call.1} parent=27 // pred_check_branch
          %627 = sbr.rel (%p625) target = $region80
        $region79: #{tpu_custom_call.1} parent=27 // pred_region
          %p628 = scmp.lt.s32.totalorder %s42, 1
          %s629 = scalar_select %p628, %s42, 1
          %s630 = scalar_lea.vmem %s13, %s629
        $region80: #{tpu_custom_call.1} parent=27 // pred_fallthru
          _
      $region28: #{tpu_custom_call.1} parent=5 // pred_fallthru
        _
      %p631 = scmp.le.s32.totalorder 1, %s34
      %p632 = scmp.lt.s32.totalorder %s34, 5
      %p633 = pnand %p631, %p632
      %p634 = pneg %p633
      // Predicated region
      $region81: #{tpu_custom_call.1} parent=5 // pred_check
        _
      $region82: #{tpu_custom_call.1} parent=5 // pred_check_branch
        %636 = sbr.rel (%p633) target = $region84
      $region83: #{tpu_custom_call.1} parent=5 // pred_region
        %s637 = ssub.s32 %s34, 1
        // Predicated region
        $region85: #{tpu_custom_call.1} parent=83 // pred_check
          %p638 = pneg %p67
        $region86: #{tpu_custom_call.1} parent=83 // pred_check_branch
          %640 = sbr.rel (%p638) target = $region88
        $region87: #{tpu_custom_call.1} parent=83 // pred_region
          %641 = dma.done [#allocation7], 16
        $region88: #{tpu_custom_call.1} parent=83 // pred_fallthru
          _
        %s642 = sand.u32 %s80, 1
        %s643 = scalar_lea.sflag [#allocation5], %s642
        %s644 = sand.u32 %s80, 1
        %s645 = smul.addr %s644, 8
        %s646 = scalar_lea.vmem [#allocation8], %s645
        // Predicated region
        $region89: #{tpu_custom_call.1} parent=83 // pred_check
          %p647 = pneg %p93
        $region90: #{tpu_custom_call.1} parent=83 // pred_check_branch
          %649 = sbr.rel (%p647) target = $region92
        $region91: #{tpu_custom_call.1} parent=83 // pred_region
          %650 = dma.done %s643, 128
        $region92: #{tpu_custom_call.1} parent=83 // pred_fallthru
          _
        %651 = sfence
        %p652 = pneg %p67
        %p653 = pneg %p64
        %s654 = sand.u32 %s80, 1
        %s655 = scalar_lea.sflag [#allocation5], %s654
        %s656 = sand.u32 %s80, 1
        %s657 = smul.addr %s656, 8
        %s658 = scalar_lea.vmem [#allocation8], %s657
        %p659 = pneg %p93
        %p660 = pneg %p90
        %p661 = scmp.lt.s32.totalorder %s44, 1
        %s662 = scalar_select %p661, %s44, 1
        %s663 = scalar_lea.vmem %s2, %s662
        %p664 = pneg %p119
        %p665 = pneg %p116
        %p666 = scmp.lt.s32.totalorder %s44, 1
        %s667 = scalar_select %p666, %s44, 1
        %s668 = scalar_lea.vmem %s3, %s667
        %p669 = pneg %p145
        %p670 = pneg %p142
        %p671 = scmp.lt.s32.totalorder %s44, 1
        %s672 = scalar_select %p671, %s44, 1
        %s673 = smul.addr %s672, 4
        %s674 = smul.addr %s673, 4
        %s675 = scalar_lea.vmem %s4, %s674
        %p676 = pneg %p171
        %p677 = pneg %p168
        %p678 = scmp.lt.s32.totalorder %s44, 1
        %s679 = scalar_select %p678, %s44, 1
        %s680 = scalar_lea.vmem %s5, %s679
        %p681 = pneg %p197
        %p682 = pneg %p194
        %p683 = scmp.lt.s32.totalorder %s44, 1
        %s684 = scalar_select %p683, %s44, 1
        %s685 = smul.addr %s684, 4
        %s686 = smul.addr %s685, 4
        %s687 = scalar_lea.vmem %s6, %s686
        %p688 = pneg %p223
        %p689 = pneg %p220
        %p690 = scmp.lt.s32.totalorder %s44, 1
        %s691 = scalar_select %p690, %s44, 1
        %s692 = scalar_lea.vmem %s7, %s691
        %p693 = pneg %p249
        %p694 = pneg %p246
        %p695 = scmp.lt.s32.totalorder %s44, 1
        %s696 = scalar_select %p695, %s44, 1
        %s697 = scalar_lea.vmem %s8, %s696
        %p698 = pneg %p275
        %p699 = pneg %p272
        %p700 = scmp.lt.s32.totalorder %s44, 1
        %s701 = scalar_select %p700, %s44, 1
        %s702 = scalar_lea.vmem %s9, %s701
        %p703 = pneg %p301
        %p704 = pneg %p298
        %p705 = scmp.lt.s32.totalorder %s44, 1
        %s706 = scalar_select %p705, %s44, 1
        %s707 = smul.addr %s706, 4
        %s708 = smul.addr %s707, 4
        %s709 = scalar_lea.vmem %s10, %s708
        %p710 = pneg %p327
        %p711 = pneg %p324
        %p712 = scmp.lt.s32.totalorder %s44, 1
        %s713 = scalar_select %p712, %s44, 1
        %s714 = scalar_lea.vmem %s11, %s713
        %p715 = pneg %p353
        %p716 = pneg %p350
        %p717 = scmp.lt.s32.totalorder %s44, 1
        %s718 = scalar_select %p717, %s44, 1
        %s719 = smul.addr %s718, 8
        %s720 = smul.addr %s719, 4
        %s721 = scalar_lea.vmem %s12, %s720
        %p722 = pneg %p379
        %p723 = pneg %p376
        %p724 = scmp.lt.s32.totalorder %s44, 1
        %s725 = scalar_select %p724, %s44, 1
        %s726 = scalar_lea.vmem %s13, %s725
        %p727 = pneg %p405
        %p728 = pneg %p402
        %p729 = pneg %p426
        %p730 = pneg %p423
        %p731 = pneg %p447
        %p732 = pneg %p444
        %p733 = pneg %p473
        %p734 = pneg %p470
        %s735 = sand.u32 %s460, 1
        %s736 = scalar_lea.sflag [#allocation6], %s735
        %s737 = sand.u32 %s460, 1
        %s738 = smul.addr %s737, 8
        %s739 = scalar_lea.vmem [#allocation9], %s738
        %p740 = pneg %p499
        %p741 = pneg %p496
        %s742 = sand.u32 %s486, 1
        %s743 = scalar_lea.sflag [#allocation11], %s742
        %s744 = sand.u32 %s486, 1
        %s745 = smul.addr %s744, 8
        %s746 = scalar_lea.vmem [#allocation10], %s745
        %p747 = scmp.lt.s32.totalorder %s44, 1
        %s748 = scalar_select %p747, %s44, 1
        %s749 = scalar_lea.vmem %s2, %s748
        %p750 = scmp.lt.s32.totalorder %s44, 1
        %s751 = scalar_select %p750, %s44, 1
        %s752 = scalar_lea.vmem %s3, %s751
        %p753 = scmp.lt.s32.totalorder %s44, 1
        %s754 = scalar_select %p753, %s44, 1
        %s755 = smul.addr %s754, 4
        %s756 = smul.addr %s755, 4
        %s757 = scalar_lea.vmem %s4, %s756
        %p758 = scmp.lt.s32.totalorder %s44, 1
        %s759 = scalar_select %p758, %s44, 1
        %s760 = scalar_lea.vmem %s5, %s759
        %p761 = scmp.lt.s32.totalorder %s44, 1
        %s762 = scalar_select %p761, %s44, 1
        %s763 = smul.addr %s762, 4
        %s764 = smul.addr %s763, 4
        %s765 = scalar_lea.vmem %s6, %s764
        %p766 = scmp.lt.s32.totalorder %s44, 1
        %s767 = scalar_select %p766, %s44, 1
        %s768 = scalar_lea.vmem %s7, %s767
        %p769 = scmp.lt.s32.totalorder %s44, 1
        %s770 = scalar_select %p769, %s44, 1
        %s771 = scalar_lea.vmem %s8, %s770
        %p772 = scmp.lt.s32.totalorder %s44, 1
        %s773 = scalar_select %p772, %s44, 1
        %s774 = scalar_lea.vmem %s9, %s773
        %p775 = scmp.lt.s32.totalorder %s44, 1
        %s776 = scalar_select %p775, %s44, 1
        %s777 = smul.addr %s776, 4
        %s778 = smul.addr %s777, 4
        %s779 = scalar_lea.vmem %s10, %s778
        %p780 = scmp.lt.s32.totalorder %s44, 1
        %s781 = scalar_select %p780, %s44, 1
        %s782 = scalar_lea.vmem %s11, %s781
        %p783 = scmp.lt.s32.totalorder %s44, 1
        %s784 = scalar_select %p783, %s44, 1
        %s785 = smul.addr %s784, 8
        %s786 = smul.addr %s785, 4
        %s787 = scalar_lea.vmem %s12, %s786
        %p788 = scmp.lt.s32.totalorder %s44, 1
        %s789 = scalar_select %p788, %s44, 1
        %s790 = scalar_lea.vmem %s13, %s789
        %p792 = scmp.eq.s32.totalorder %s44, 0
        // Predicated region
        $region93: #{tpu_custom_call.1} parent=83 // pred_check
          %p793 = pneg %p792
        $region94: #{tpu_custom_call.1} parent=83 // pred_check_branch
          %795 = sbr.rel (%p793) target = $region96
        $region95: #{tpu_custom_call.1} parent=83 // pred_region
          %v796 = vld [vmem:[%s646] sm:$0xff]
          %vm797 = vcmask 261120
          %798 = vst.msk [vmem:[#allocation2] sm:$0xff] %vm797, %v796
          %s799 = sld [smem:[#allocation4]]
          %s800 = scvt.s32.f32 %s799
          %v801 = vstv %s800
          %v802 = vmul.f32 %v801, %v796
          %803 = vst.msk [vmem:[#allocation3] sm:$0xff] %vm797, %v802
        $region96: #{tpu_custom_call.1} parent=83 // pred_fallthru
          _
        %v804 = vld [vmem:[#allocation2] sm:$0xff]
        %v805 = vld [vmem:[%s749] sm:$0x1]
        %v806 = vld [vmem:[%s752] sm:$0x1]
        %vm807 = vcmask 261120
        %v808 = vsel %vm807, %v804, 0.0
        %809 = vadd.xlane.f32.xlu0 %v808
        %v810 = vpop.xlane.xlu0 %809
        %v811 = vrcp.pop 32.0
        %v812 = vmul.f32 %v810, %v811
        %v813 = vsub.f32 %v804, %v812
        %v814 = vmul.f32 %v813, %v813
        %v815 = vsel %vm807, %v814, 0.0
        %816 = vadd.xlane.f32.xlu0 %v815
        %v817 = vpop.xlane.xlu0 %816
        %v818 = vmul.f32 %v817, %v811
        %v819 = vadd.f32 %v818, 1e-05
        %v820 = vrsqrt.pop %v819
        %v821 = vmul.f32 %v813, %v820
        %v823 = vlaneseq
        %v824 = vshrl.u32 %v823, 7
        %v825 = vsub.s32 0, %v824
        %v826 = vrot.slane %v805, %v825
        %v828 = vmul.f32 %v821, %v826
        %v830 = vlaneseq
        %v831 = vshrl.u32 %v830, 7
        %v832 = vsub.s32 0, %v831
        %v833 = vrot.slane %v806, %v832
        %v835 = vadd.f32 %v828, %v833
        %v836 = vpack.c.bf16 %v835, %v835
        %v837 = vld [vmem:[%s757] sm:$0xf]
        %v838 = vld [vmem:[%s757 + $0x4] sm:$0xf]
        %v839 = vld [vmem:[%s757 + $0x8] sm:$0xf]
        %v840 = vld [vmem:[%s757 + $0xc] sm:$0xf]
        %v841 = vld [vmem:[%s760] sm:$0x1]
        %v843 = vlaneseq
        %v844 = vshrl.u32 %v843, 7
        %v845 = vsub.s32 0, %v844
        %v846 = vrot.slane %v841, %v845
        %v852 = vunpack.c.l.b16 %v837
        %v853 = vunpack.c.l.b16 %v838
        %v854 = vunpack.c.l.b16 %v839
        %v855 = vunpack.c.l.b16 %v840
        %v856 = vpack.c.b16 %v853, %v852
        %v857 = vpack.c.b16 %v855, %v854
        %v861 = vsel %vm807, %v836, 0
        %863 = vmatprep.subr.bf16.mxu0 0
        %864 = vmatpush1.bf16.msra.mxu0 0
        %865 = vmatprep.subr.bf16.mxu0 0
        %866 = vmatpush1.bf16.msra.mxu0 0
        %867 = vmatprep.subr.bf16.mxu0 0
        %868 = vmatpush1.bf16.msra.mxu0 0
        %869 = vmatprep.subr.bf16.mxu0 0
        %870 = vmatpush1.bf16.msra.mxu0 0
        %871 = vmatprep.subr.bf16.mxu0 0
        %872 = vmatpush1.bf16.msra.mxu0 0
        %873 = vmatprep.subr.bf16.mxu0 0
        %874 = vmatpush1.bf16.msra.mxu0 0
        %875 = vmatprep.subr.bf16.mxu0 0
        %876 = vmatpush1.bf16.msra.mxu0 %v857
        %877 = vmatprep.subr.bf16.mxu0 0
        %878 = vmatpush1.bf16.msra.mxu0 %v856
        %879 = vmatprep.subr.bf16.mxu0 0
        %880 = vmatpush2.bf16.msra.mxu0 0
        %881 = vmatprep.subr.bf16.mxu0 0
        %882 = vmatpush2.bf16.msra.mxu0 0
        %883 = vmatprep.subr.bf16.mxu0 0
        %884 = vmatpush2.bf16.msra.mxu0 0
        %885 = vmatprep.subr.bf16.mxu0 0
        %886 = vmatpush2.bf16.msra.mxu0 0
        %887 = vmatprep.subr.bf16.mxu0 0
        %888 = vmatpush2.bf16.msra.mxu0 0
        %889 = vmatprep.subr.bf16.mxu0 0
        %890 = vmatpush2.bf16.msra.mxu0 0
        %891 = vmatprep.subr.bf16.mxu0 0
        %892 = vmatpush2.bf16.msra.mxu0 0
        %893 = vmatprep.subr.bf16.mxu0 0
        %894 = vmatpush2.bf16.msra.mxu0 0
        %895 = vmatprep.mubr.bf16.mxu0 0
        %896 = vmatmul.mubr.bf16.gmra.mxu0 %v861
        %v897 = vpop.f32.mrf.mxu0
        %v898 = vadd.f32 %v846, %v897
        %v899 = vpop.f32.mrf.mxu0
        %v900 = vpop.f32.mrf.mxu0
        %v901 = vpop.f32.mrf.mxu0
        %902 = vdwg.mxu0
        %904 = vrot.lane.b32.xlu0 %v898, 120
        %v905 = vpop.permute.xlu0 %904
        %907 = vrot.lane.b32.xlu0 %v898, 112
        %v908 = vpop.permute.xlu0 %907
        %910 = vrot.lane.b32.xlu0 %v898, 104
        %v911 = vpop.permute.xlu0 %910
        %v913 = vpack.c.bf16 %v898, %v898
        %v914 = vpack.c.bf16 %v905, %v905
        %v915 = vpack.c.bf16 %v908, %v908
        %v916 = vpack.c.bf16 %v911, %v911
        %918 = vrot.lane.b32.xlu0 %v913, 96
        %v919 = vpop.permute.xlu0 %918
        %vm920 = vcmask 64512
        %v922 = vsel %vm920, %v913, 0
        %v925 = vsel %vm920, %v919, 0
        %927 = vmatprep.subr.bf16.mxu0 0
        %928 = vmatpush1.bf16.xpose.msra.mxu0 0
        %929 = vmatprep.subr.bf16.mxu0 0
        %930 = vmatpush1.bf16.xpose.msra.mxu0 0
        %931 = vmatprep.subr.bf16.mxu0 0
        %932 = vmatpush1.bf16.xpose.msra.mxu0 0
        %933 = vmatprep.subr.bf16.mxu0 0
        %934 = vmatpush1.bf16.xpose.msra.mxu0 0
        %935 = vmatprep.subr.bf16.mxu0 0
        %936 = vmatpush1.bf16.xpose.msra.mxu0 0
        %937 = vmatprep.subr.bf16.mxu0 0
        %938 = vmatpush1.bf16.xpose.msra.mxu0 0
        %939 = vmatprep.subr.bf16.mxu0 0
        %940 = vmatpush1.bf16.xpose.msra.mxu0 0
        %941 = vmatprep.subr.bf16.mxu0 0
        %942 = vmatpush1.bf16.xpose.msra.mxu0 %v925
        %943 = vmatprep.subr.bf16.mxu0 0
        %944 = vmatpush2.bf16.xpose.msra.mxu0 0
        %945 = vmatprep.subr.bf16.mxu0 0
        %946 = vmatpush2.bf16.xpose.msra.mxu0 0
        %947 = vmatprep.subr.bf16.mxu0 0
        %948 = vmatpush2.bf16.xpose.msra.mxu0 0
        %949 = vmatprep.subr.bf16.mxu0 0
        %950 = vmatpush2.bf16.xpose.msra.mxu0 0
        %951 = vmatprep.subr.bf16.mxu0 0
        %952 = vmatpush2.bf16.xpose.msra.mxu0 0
        %953 = vmatprep.subr.bf16.mxu0 0
        %954 = vmatpush2.bf16.xpose.msra.mxu0 0
        %955 = vmatprep.subr.bf16.mxu0 0
        %956 = vmatpush2.bf16.xpose.msra.mxu0 0
        %957 = vmatprep.subr.bf16.mxu0 0
        %958 = vmatpush2.bf16.xpose.msra.mxu0 0
        %959 = vmatprep.mubr.bf16.mxu0 0
        %960 = vmatmul.mubr.bf16.gmra.mxu0 %v922
        %v961 = vpop.f32.mrf.mxu0
        %v962 = vadd.f32 0.0, %v961
        %v963 = vpop.f32.mrf.mxu0
        %v964 = vpop.f32.mrf.mxu0
        %v965 = vpop.f32.mrf.mxu0
        %966 = vdwg.mxu0
        %968 = vrot.lane.b32.xlu0 %v914, 96
        %v969 = vpop.permute.xlu0 %968
        %v971 = vsel %vm920, %v914, 0
        %v974 = vsel %vm920, %v969, 0
        %976 = vmatprep.subr.bf16.mxu0 0
        %977 = vmatpush1.bf16.xpose.msra.mxu0 0
        %978 = vmatprep.subr.bf16.mxu0 0
        %979 = vmatpush1.bf16.xpose.msra.mxu0 0
        %980 = vmatprep.subr.bf16.mxu0 0
        %981 = vmatpush1.bf16.xpose.msra.mxu0 0
        %982 = vmatprep.subr.bf16.mxu0 0
        %983 = vmatpush1.bf16.xpose.msra.mxu0 0
        %984 = vmatprep.subr.bf16.mxu0 0
        %985 = vmatpush1.bf16.xpose.msra.mxu0 0
        %986 = vmatprep.subr.bf16.mxu0 0
        %987 = vmatpush1.bf16.xpose.msra.mxu0 0
        %988 = vmatprep.subr.bf16.mxu0 0
        %989 = vmatpush1.bf16.xpose.msra.mxu0 0
        %990 = vmatprep.subr.bf16.mxu0 0
        %991 = vmatpush1.bf16.xpose.msra.mxu0 %v974
        %992 = vmatprep.subr.bf16.mxu0 0
        %993 = vmatpush2.bf16.xpose.msra.mxu0 0
        %994 = vmatprep.subr.bf16.mxu0 0
        %995 = vmatpush2.bf16.xpose.msra.mxu0 0
        %996 = vmatprep.subr.bf16.mxu0 0
        %997 = vmatpush2.bf16.xpose.msra.mxu0 0
        %998 = vmatprep.subr.bf16.mxu0 0
        %999 = vmatpush2.bf16.xpose.msra.mxu0 0
        %1000 = vmatprep.subr.bf16.mxu0 0
        %1001 = vmatpush2.bf16.xpose.msra.mxu0 0
        %1002 = vmatprep.subr.bf16.mxu0 0
        %1003 = vmatpush2.bf16.xpose.msra.mxu0 0
        %1004 = vmatprep.subr.bf16.mxu0 0
        %1005 = vmatpush2.bf16.xpose.msra.mxu0 0
        %1006 = vmatprep.subr.bf16.mxu0 0
        %1007 = vmatpush2.bf16.xpose.msra.mxu0 0
        %1008 = vmatprep.mubr.bf16.mxu0 0
        %1009 = vmatmul.mubr.bf16.gmra.mxu0 %v971
        %v1010 = vpop.f32.mrf.mxu0
        %v1011 = vadd.f32 0.0, %v1010
        %v1012 = vpop.f32.mrf.mxu0
        %v1013 = vpop.f32.mrf.mxu0
        %v1014 = vpop.f32.mrf.mxu0
        %1015 = vdwg.mxu0
        %1017 = vrot.lane.b32.xlu0 %v915, 96
        %v1018 = vpop.permute.xlu0 %1017
        %v1020 = vsel %vm920, %v915, 0
        %v1023 = vsel %vm920, %v1018, 0
        %1025 = vmatprep.subr.bf16.mxu0 0
        %1026 = vmatpush1.bf16.xpose.msra.mxu0 0
        %1027 = vmatprep.subr.bf16.mxu0 0
        %1028 = vmatpush1.bf16.xpose.msra.mxu0 0
        %1029 = vmatprep.subr.bf16.mxu0 0
        %1030 = vmatpush1.bf16.xpose.msra.mxu0 0
        %1031 = vmatprep.subr.bf16.mxu0 0
        %1032 = vmatpush1.bf16.xpose.msra.mxu0 0
        %1033 = vmatprep.subr.bf16.mxu0 0
        %1034 = vmatpush1.bf16.xpose.msra.mxu0 0
        %1035 = vmatprep.subr.bf16.mxu0 0
        %1036 = vmatpush1.bf16.xpose.msra.mxu0 0
        %1037 = vmatprep.subr.bf16.mxu0 0
        %1038 = vmatpush1.bf16.xpose.msra.mxu0 0
        %1039 = vmatprep.subr.bf16.mxu0 0
        %1040 = vmatpush1.bf16.xpose.msra.mxu0 %v1023
        %1041 = vmatprep.subr.bf16.mxu0 0
        %1042 = vmatpush2.bf16.xpose.msra.mxu0 0
        %1043 = vmatprep.subr.bf16.mxu0 0
        %1044 = vmatpush2.bf16.xpose.msra.mxu0 0
        %1045 = vmatprep.subr.bf16.mxu0 0
        %1046 = vmatpush2.bf16.xpose.msra.mxu0 0
        %1047 = vmatprep.subr.bf16.mxu0 0
        %1048 = vmatpush2.bf16.xpose.msra.mxu0 0
        %1049 = vmatprep.subr.bf16.mxu0 0
        %1050 = vmatpush2.bf16.xpose.msra.mxu0 0
        %1051 = vmatprep.subr.bf16.mxu0 0
        %1052 = vmatpush2.bf16.xpose.msra.mxu0 0
        %1053 = vmatprep.subr.bf16.mxu0 0
        %1054 = vmatpush2.bf16.xpose.msra.mxu0 0
        %1055 = vmatprep.subr.bf16.mxu0 0
        %1056 = vmatpush2.bf16.xpose.msra.mxu0 0
        %1057 = vmatprep.mubr.bf16.mxu0 0
        %1058 = vmatmul.mubr.bf16.gmra.mxu0 %v1020
        %v1059 = vpop.f32.mrf.mxu0
        %v1060 = vadd.f32 0.0, %v1059
        %v1061 = vpop.f32.mrf.mxu0
        %v1062 = vpop.f32.mrf.mxu0
        %v1063 = vpop.f32.mrf.mxu0
        %1064 = vdwg.mxu0
        %1066 = vrot.lane.b32.xlu0 %v916, 96
        %v1067 = vpop.permute.xlu0 %1066
        %v1069 = vsel %vm920, %v916, 0
        %v1072 = vsel %vm920, %v1067, 0
        %1074 = vmatprep.subr.bf16.mxu0 0
        %1075 = vmatpush1.bf16.xpose.msra.mxu0 0
        %1076 = vmatprep.subr.bf16.mxu0 0
        %1077 = vmatpush1.bf16.xpose.msra.mxu0 0
        %1078 = vmatprep.subr.bf16.mxu0 0
        %1079 = vmatpush1.bf16.xpose.msra.mxu0 0
        %1080 = vmatprep.subr.bf16.mxu0 0
        %1081 = vmatpush1.bf16.xpose.msra.mxu0 0
        %1082 = vmatprep.subr.bf16.mxu0 0
        %1083 = vmatpush1.bf16.xpose.msra.mxu0 0
        %1084 = vmatprep.subr.bf16.mxu0 0
        %1085 = vmatpush1.bf16.xpose.msra.mxu0 0
        %1086 = vmatprep.subr.bf16.mxu0 0
        %1087 = vmatpush1.bf16.xpose.msra.mxu0 0
        %1088 = vmatprep.subr.bf16.mxu0 0
        %1089 = vmatpush1.bf16.xpose.msra.mxu0 %v1072
        %1090 = vmatprep.subr.bf16.mxu0 0
        %1091 = vmatpush2.bf16.xpose.msra.mxu0 0
        %1092 = vmatprep.subr.bf16.mxu0 0
        %1093 = vmatpush2.bf16.xpose.msra.mxu0 0
        %1094 = vmatprep.subr.bf16.mxu0 0
        %1095 = vmatpush2.bf16.xpose.msra.mxu0 0
        %1096 = vmatprep.subr.bf16.mxu0 0
        %1097 = vmatpush2.bf16.xpose.msra.mxu0 0
        %1098 = vmatprep.subr.bf16.mxu0 0
        %1099 = vmatpush2.bf16.xpose.msra.mxu0 0
        %1100 = vmatprep.subr.bf16.mxu0 0
        %1101 = vmatpush2.bf16.xpose.msra.mxu0 0
        %1102 = vmatprep.subr.bf16.mxu0 0
        %1103 = vmatpush2.bf16.xpose.msra.mxu0 0
        %1104 = vmatprep.subr.bf16.mxu0 0
        %1105 = vmatpush2.bf16.xpose.msra.mxu0 0
        %1106 = vmatprep.mubr.bf16.mxu0 0
        %1107 = vmatmul.mubr.bf16.gmra.mxu0 %v1069
        %v1108 = vpop.f32.mrf.mxu0
        %v1109 = vadd.f32 0.0, %v1108
        %v1110 = vpop.f32.mrf.mxu0
        %v1111 = vpop.f32.mrf.mxu0
        %v1112 = vpop.f32.mrf.mxu0
        %1113 = vdwg.mxu0
        %v1114 = vsel %vm920, %v962, -inf
        %1115 = vmax.xlane.f32.xlu0 %v1114
        %v1116 = vpop.xlane.xlu0 %1115
        %v1117 = vsel %vm920, %v1011, -inf
        %1118 = vmax.xlane.f32.xlu0 %v1117
        %v1119 = vpop.xlane.xlu0 %1118
        %v1120 = vsel %vm920, %v1060, -inf
        %1121 = vmax.xlane.f32.xlu0 %v1120
        %v1122 = vpop.xlane.xlu0 %1121
        %v1123 = vsel %vm920, %v1109, -inf
        %1124 = vmax.xlane.f32.xlu0 %v1123
        %v1125 = vpop.xlane.xlu0 %1124
        %v1126 = vsub.f32 %v962, %v1116
        %v1127 = vsub.f32 %v1011, %v1119
        %v1128 = vsub.f32 %v1060, %v1122
        %v1129 = vsub.f32 %v1109, %v1125
        %v1130 = vmul.f32 %v1126, 1.442695
        %v1131 = vpow.pop %v1130
        %v1132 = vmul.f32 %v1127, 1.442695
        %v1133 = vpow.pop %v1132
        %v1134 = vmul.f32 %v1128, 1.442695
        %v1135 = vpow.pop %v1134
        %v1136 = vmul.f32 %v1129, 1.442695
        %v1137 = vpow.pop %v1136
        %v1138 = vsel %vm920, %v1131, 0.0
        %1139 = vadd.xlane.f32.xlu0 %v1138
        %v1140 = vpop.xlane.xlu0 %1139
        %v1141 = vsel %vm920, %v1133, 0.0
        %1142 = vadd.xlane.f32.xlu0 %v1141
        %v1143 = vpop.xlane.xlu0 %1142
        %v1144 = vsel %vm920, %v1135, 0.0
        %1145 = vadd.xlane.f32.xlu0 %v1144
        %v1146 = vpop.xlane.xlu0 %1145
        %v1147 = vsel %vm920, %v1137, 0.0
        %1148 = vadd.xlane.f32.xlu0 %v1147
        %v1149 = vpop.xlane.xlu0 %1148
        %v1150 = vrcp.pop %v1140
        %v1151 = vmul.f32 %v1131, %v1150
        %v1152 = vrcp.pop %v1143
        %v1153 = vmul.f32 %v1133, %v1152
        %v1154 = vrcp.pop %v1146
        %v1155 = vmul.f32 %v1135, %v1154
        %v1156 = vrcp.pop %v1149
        %v1157 = vmul.f32 %v1137, %v1156
        %v1158 = vpack.c.bf16 %v1151, %v1151
        %v1159 = vpack.c.bf16 %v1153, %v1153
        %v1160 = vpack.c.bf16 %v1155, %v1155
        %v1161 = vpack.c.bf16 %v1157, %v1157
        %1162 = vrot.lane.b32.xlu0 %v913, 64
        %v1163 = vpop.permute.xlu0 %1162
        %v1165 = vsel %vm920, %v1158, 0
        %vm1167 = vcmask 1043456
        %v1169 = vsel %vm1167, %v1163, 0
        %1171 = vmatprep.subr.bf16.mxu0 0
        %1172 = vmatpush1.bf16.msra.mxu0 0
        %1173 = vmatprep.subr.bf16.mxu0 0
        %1174 = vmatpush1.bf16.msra.mxu0 0
        %1175 = vmatprep.subr.bf16.mxu0 0
        %1176 = vmatpush1.bf16.msra.mxu0 0
        %1177 = vmatprep.subr.bf16.mxu0 0
        %1178 = vmatpush1.bf16.msra.mxu0 0
        %1179 = vmatprep.subr.bf16.mxu0 0
        %1180 = vmatpush1.bf16.msra.mxu0 0
        %1181 = vmatprep.subr.bf16.mxu0 0
        %1182 = vmatpush1.bf16.msra.mxu0 0
        %1183 = vmatprep.subr.bf16.mxu0 0
        %1184 = vmatpush1.bf16.msra.mxu0 0
        %1185 = vmatprep.subr.bf16.mxu0 0
        %1186 = vmatpush1.bf16.msra.mxu0 %v1169
        %1187 = vmatprep.subr.bf16.mxu0 0
        %1188 = vmatpush2.bf16.msra.mxu0 0
        %1189 = vmatprep.subr.bf16.mxu0 0
        %1190 = vmatpush2.bf16.msra.mxu0 0
        %1191 = vmatprep.subr.bf16.mxu0 0
        %1192 = vmatpush2.bf16.msra.mxu0 0
        %1193 = vmatprep.subr.bf16.mxu0 0
        %1194 = vmatpush2.bf16.msra.mxu0 0
        %1195 = vmatprep.subr.bf16.mxu0 0
        %1196 = vmatpush2.bf16.msra.mxu0 0
        %1197 = vmatprep.subr.bf16.mxu0 0
        %1198 = vmatpush2.bf16.msra.mxu0 0
        %1199 = vmatprep.subr.bf16.mxu0 0
        %1200 = vmatpush2.bf16.msra.mxu0 0
        %1201 = vmatprep.subr.bf16.mxu0 0
        %1202 = vmatpush2.bf16.msra.mxu0 0
        %1203 = vmatprep.mubr.bf16.mxu0 0
        %1204 = vmatmul.mubr.bf16.gmra.mxu0 %v1165
        %v1205 = vpop.f32.mrf.mxu0
        %v1206 = vadd.f32 0.0, %v1205
        %v1207 = vpop.f32.mrf.mxu0
        %v1208 = vpop.f32.mrf.mxu0
        %v1209 = vpop.f32.mrf.mxu0
        %1210 = vdwg.mxu0
        %1211 = vrot.lane.b32.xlu0 %v914, 64
        %v1212 = vpop.permute.xlu0 %1211
        %v1214 = vsel %vm920, %v1159, 0
        %v1217 = vsel %vm1167, %v1212, 0
        %1219 = vmatprep.subr.bf16.mxu0 0
        %1220 = vmatpush1.bf16.msra.mxu0 0
        %1221 = vmatprep.subr.bf16.mxu0 0
        %1222 = vmatpush1.bf16.msra.mxu0 0
        %1223 = vmatprep.subr.bf16.mxu0 0
        %1224 = vmatpush1.bf16.msra.mxu0 0
        %1225 = vmatprep.subr.bf16.mxu0 0
        %1226 = vmatpush1.bf16.msra.mxu0 0
        %1227 = vmatprep.subr.bf16.mxu0 0
        %1228 = vmatpush1.bf16.msra.mxu0 0
        %1229 = vmatprep.subr.bf16.mxu0 0
        %1230 = vmatpush1.bf16.msra.mxu0 0
        %1231 = vmatprep.subr.bf16.mxu0 0
        %1232 = vmatpush1.bf16.msra.mxu0 0
        %1233 = vmatprep.subr.bf16.mxu0 0
        %1234 = vmatpush1.bf16.msra.mxu0 %v1217
        %1235 = vmatprep.subr.bf16.mxu0 0
        %1236 = vmatpush2.bf16.msra.mxu0 0
        %1237 = vmatprep.subr.bf16.mxu0 0
        %1238 = vmatpush2.bf16.msra.mxu0 0
        %1239 = vmatprep.subr.bf16.mxu0 0
        %1240 = vmatpush2.bf16.msra.mxu0 0
        %1241 = vmatprep.subr.bf16.mxu0 0
        %1242 = vmatpush2.bf16.msra.mxu0 0
        %1243 = vmatprep.subr.bf16.mxu0 0
        %1244 = vmatpush2.bf16.msra.mxu0 0
        %1245 = vmatprep.subr.bf16.mxu0 0
        %1246 = vmatpush2.bf16.msra.mxu0 0
        %1247 = vmatprep.subr.bf16.mxu0 0
        %1248 = vmatpush2.bf16.msra.mxu0 0
        %1249 = vmatprep.subr.bf16.mxu0 0
        %1250 = vmatpush2.bf16.msra.mxu0 0
        %1251 = vmatprep.mubr.bf16.mxu0 0
        %1252 = vmatmul.mubr.bf16.gmra.mxu0 %v1214
        %v1253 = vpop.f32.mrf.mxu0
        %v1254 = vadd.f32 0.0, %v1253
        %v1255 = vpop.f32.mrf.mxu0
        %v1256 = vpop.f32.mrf.mxu0
        %v1257 = vpop.f32.mrf.mxu0
        %1258 = vdwg.mxu0
        %1259 = vrot.lane.b32.xlu0 %v915, 64
        %v1260 = vpop.permute.xlu0 %1259
        %v1262 = vsel %vm920, %v1160, 0
        %v1265 = vsel %vm1167, %v1260, 0
        %1267 = vmatprep.subr.bf16.mxu0 0
        %1268 = vmatpush1.bf16.msra.mxu0 0
        %1269 = vmatprep.subr.bf16.mxu0 0
        %1270 = vmatpush1.bf16.msra.mxu0 0
        %1271 = vmatprep.subr.bf16.mxu0 0
        %1272 = vmatpush1.bf16.msra.mxu0 0
        %1273 = vmatprep.subr.bf16.mxu0 0
        %1274 = vmatpush1.bf16.msra.mxu0 0
        %1275 = vmatprep.subr.bf16.mxu0 0
        %1276 = vmatpush1.bf16.msra.mxu0 0
        %1277 = vmatprep.subr.bf16.mxu0 0
        %1278 = vmatpush1.bf16.msra.mxu0 0
        %1279 = vmatprep.subr.bf16.mxu0 0
        %1280 = vmatpush1.bf16.msra.mxu0 0
        %1281 = vmatprep.subr.bf16.mxu0 0
        %1282 = vmatpush1.bf16.msra.mxu0 %v1265
        %1283 = vmatprep.subr.bf16.mxu0 0
        %1284 = vmatpush2.bf16.msra.mxu0 0
        %1285 = vmatprep.subr.bf16.mxu0 0
        %1286 = vmatpush2.bf16.msra.mxu0 0
        %1287 = vmatprep.subr.bf16.mxu0 0
        %1288 = vmatpush2.bf16.msra.mxu0 0
        %1289 = vmatprep.subr.bf16.mxu0 0
        %1290 = vmatpush2.bf16.msra.mxu0 0
        %1291 = vmatprep.subr.bf16.mxu0 0
        %1292 = vmatpush2.bf16.msra.mxu0 0
        %1293 = vmatprep.subr.bf16.mxu0 0
        %1294 = vmatpush2.bf16.msra.mxu0 0
        %1295 = vmatprep.subr.bf16.mxu0 0
        %1296 = vmatpush2.bf16.msra.mxu0 0
        %1297 = vmatprep.subr.bf16.mxu0 0
        %1298 = vmatpush2.bf16.msra.mxu0 0
        %1299 = vmatprep.mubr.bf16.mxu0 0
        %1300 = vmatmul.mubr.bf16.gmra.mxu0 %v1262
        %v1301 = vpop.f32.mrf.mxu0
        %v1302 = vadd.f32 0.0, %v1301
        %v1303 = vpop.f32.mrf.mxu0
        %v1304 = vpop.f32.mrf.mxu0
        %v1305 = vpop.f32.mrf.mxu0
        %1306 = vdwg.mxu0
        %1307 = vrot.lane.b32.xlu0 %v916, 64
        %v1308 = vpop.permute.xlu0 %1307
        %v1310 = vsel %vm920, %v1161, 0
        %v1313 = vsel %vm1167, %v1308, 0
        %1315 = vmatprep.subr.bf16.mxu0 0
        %1316 = vmatpush1.bf16.msra.mxu0 0
        %1317 = vmatprep.subr.bf16.mxu0 0
        %1318 = vmatpush1.bf16.msra.mxu0 0
        %1319 = vmatprep.subr.bf16.mxu0 0
        %1320 = vmatpush1.bf16.msra.mxu0 0
        %1321 = vmatprep.subr.bf16.mxu0 0
        %1322 = vmatpush1.bf16.msra.mxu0 0
        %1323 = vmatprep.subr.bf16.mxu0 0
        %1324 = vmatpush1.bf16.msra.mxu0 0
        %1325 = vmatprep.subr.bf16.mxu0 0
        %1326 = vmatpush1.bf16.msra.mxu0 0
        %1327 = vmatprep.subr.bf16.mxu0 0
        %1328 = vmatpush1.bf16.msra.mxu0 0
        %1329 = vmatprep.subr.bf16.mxu0 0
        %1330 = vmatpush1.bf16.msra.mxu0 %v1313
        %1331 = vmatprep.subr.bf16.mxu0 0
        %1332 = vmatpush2.bf16.msra.mxu0 0
        %1333 = vmatprep.subr.bf16.mxu0 0
        %1334 = vmatpush2.bf16.msra.mxu0 0
        %1335 = vmatprep.subr.bf16.mxu0 0
        %1336 = vmatpush2.bf16.msra.mxu0 0
        %1337 = vmatprep.subr.bf16.mxu0 0
        %1338 = vmatpush2.bf16.msra.mxu0 0
        %1339 = vmatprep.subr.bf16.mxu0 0
        %1340 = vmatpush2.bf16.msra.mxu0 0
        %1341 = vmatprep.subr.bf16.mxu0 0
        %1342 = vmatpush2.bf16.msra.mxu0 0
        %1343 = vmatprep.subr.bf16.mxu0 0
        %1344 = vmatpush2.bf16.msra.mxu0 0
        %1345 = vmatprep.subr.bf16.mxu0 0
        %1346 = vmatpush2.bf16.msra.mxu0 0
        %1347 = vmatprep.mubr.bf16.mxu0 0
        %1348 = vmatmul.mubr.bf16.gmra.mxu0 %v1310
        %v1349 = vpop.f32.mrf.mxu0
        %v1350 = vadd.f32 0.0, %v1349
        %v1351 = vpop.f32.mrf.mxu0
        %v1352 = vpop.f32.mrf.mxu0
        %v1353 = vpop.f32.mrf.mxu0
        %1354 = vdwg.mxu0
        %v1355 = vpack.c.bf16 %v1206, %v1206
        %v1356 = vpack.c.bf16 %v1254, %v1254
        %v1357 = vpack.c.bf16 %v1302, %v1302
        %v1358 = vpack.c.bf16 %v1350, %v1350
        %v1359 = vld [vmem:[%s765] sm:$0xf]
        %v1360 = vld [vmem:[%s765 + $0x4] sm:$0xf]
        %v1361 = vld [vmem:[%s765 + $0x8] sm:$0xf]
        %v1362 = vld [vmem:[%s765 + $0xc] sm:$0xf]
        %v1364 = vsel %vm920, %v1355, 0
        %v1367 = vsel %vm1167, %v1359, 0
        %1369 = vmatprep.subr.bf16.mxu0 0
        %1370 = vmatpush1.bf16.msra.mxu0 0
        %1371 = vmatprep.subr.bf16.mxu0 0
        %1372 = vmatpush1.bf16.msra.mxu0 0
        %1373 = vmatprep.subr.bf16.mxu0 0
        %1374 = vmatpush1.bf16.msra.mxu0 0
        %1375 = vmatprep.subr.bf16.mxu0 0
        %1376 = vmatpush1.bf16.msra.mxu0 0
        %1377 = vmatprep.subr.bf16.mxu0 0
        %1378 = vmatpush1.bf16.msra.mxu0 0
        %1379 = vmatprep.subr.bf16.mxu0 0
        %1380 = vmatpush1.bf16.msra.mxu0 0
        %1381 = vmatprep.subr.bf16.mxu0 0
        %1382 = vmatpush1.bf16.msra.mxu0 0
        %1383 = vmatprep.subr.bf16.mxu0 0
        %1384 = vmatpush1.bf16.msra.mxu0 %v1367
        %1385 = vmatprep.subr.bf16.mxu0 0
        %1386 = vmatpush2.bf16.msra.mxu0 0
        %1387 = vmatprep.subr.bf16.mxu0 0
        %1388 = vmatpush2.bf16.msra.mxu0 0
        %1389 = vmatprep.subr.bf16.mxu0 0
        %1390 = vmatpush2.bf16.msra.mxu0 0
        %1391 = vmatprep.subr.bf16.mxu0 0
        %1392 = vmatpush2.bf16.msra.mxu0 0
        %1393 = vmatprep.subr.bf16.mxu0 0
        %1394 = vmatpush2.bf16.msra.mxu0 0
        %1395 = vmatprep.subr.bf16.mxu0 0
        %1396 = vmatpush2.bf16.msra.mxu0 0
        %1397 = vmatprep.subr.bf16.mxu0 0
        %1398 = vmatpush2.bf16.msra.mxu0 0
        %1399 = vmatprep.subr.bf16.mxu0 0
        %1400 = vmatpush2.bf16.msra.mxu0 0
        %1401 = vmatprep.mubr.bf16.mxu0 0
        %1402 = vmatmul.mubr.bf16.gmra.mxu0 %v1364
        %v1403 = vpop.f32.mrf.mxu0
        %v1404 = vadd.f32 0.0, %v1403
        %v1405 = vpop.f32.mrf.mxu0
        %v1406 = vpop.f32.mrf.mxu0
        %v1407 = vpop.f32.mrf.mxu0
        %1408 = vdwg.mxu0
        %v1410 = vsel %vm920, %v1356, 0
        %v1413 = vsel %vm1167, %v1360, 0
        %1415 = vmatprep.subr.bf16.mxu0 0
        %1416 = vmatpush1.bf16.msra.mxu0 0
        %1417 = vmatprep.subr.bf16.mxu0 0
        %1418 = vmatpush1.bf16.msra.mxu0 0
        %1419 = vmatprep.subr.bf16.mxu0 0
        %1420 = vmatpush1.bf16.msra.mxu0 0
        %1421 = vmatprep.subr.bf16.mxu0 0
        %1422 = vmatpush1.bf16.msra.mxu0 0
        %1423 = vmatprep.subr.bf16.mxu0 0
        %1424 = vmatpush1.bf16.msra.mxu0 0
        %1425 = vmatprep.subr.bf16.mxu0 0
        %1426 = vmatpush1.bf16.msra.mxu0 0
        %1427 = vmatprep.subr.bf16.mxu0 0
        %1428 = vmatpush1.bf16.msra.mxu0 0
        %1429 = vmatprep.subr.bf16.mxu0 0
        %1430 = vmatpush1.bf16.msra.mxu0 %v1413
        %1431 = vmatprep.subr.bf16.mxu0 0
        %1432 = vmatpush2.bf16.msra.mxu0 0
        %1433 = vmatprep.subr.bf16.mxu0 0
        %1434 = vmatpush2.bf16.msra.mxu0 0
        %1435 = vmatprep.subr.bf16.mxu0 0
        %1436 = vmatpush2.bf16.msra.mxu0 0
        %1437 = vmatprep.subr.bf16.mxu0 0
        %1438 = vmatpush2.bf16.msra.mxu0 0
        %1439 = vmatprep.subr.bf16.mxu0 0
        %1440 = vmatpush2.bf16.msra.mxu0 0
        %1441 = vmatprep.subr.bf16.mxu0 0
        %1442 = vmatpush2.bf16.msra.mxu0 0
        %1443 = vmatprep.subr.bf16.mxu0 0
        %1444 = vmatpush2.bf16.msra.mxu0 0
        %1445 = vmatprep.subr.bf16.mxu0 0
        %1446 = vmatpush2.bf16.msra.mxu0 0
        %1447 = vmatprep.mubr.bf16.mxu0 0
        %1448 = vmatmul.mubr.bf16.gmra.mxu0 %v1410
        %v1449 = vpop.f32.mrf.mxu0
        %v1450 = vadd.f32 0.0, %v1449
        %v1451 = vpop.f32.mrf.mxu0
        %v1452 = vpop.f32.mrf.mxu0
        %v1453 = vpop.f32.mrf.mxu0
        %1454 = vdwg.mxu0
        %v1456 = vsel %vm920, %v1357, 0
        %v1459 = vsel %vm1167, %v1361, 0
        %1461 = vmatprep.subr.bf16.mxu0 0
        %1462 = vmatpush1.bf16.msra.mxu0 0
        %1463 = vmatprep.subr.bf16.mxu0 0
        %1464 = vmatpush1.bf16.msra.mxu0 0
        %1465 = vmatprep.subr.bf16.mxu0 0
        %1466 = vmatpush1.bf16.msra.mxu0 0
        %1467 = vmatprep.subr.bf16.mxu0 0
        %1468 = vmatpush1.bf16.msra.mxu0 0
        %1469 = vmatprep.subr.bf16.mxu0 0
        %1470 = vmatpush1.bf16.msra.mxu0 0
        %1471 = vmatprep.subr.bf16.mxu0 0
        %1472 = vmatpush1.bf16.msra.mxu0 0
        %1473 = vmatprep.subr.bf16.mxu0 0
        %1474 = vmatpush1.bf16.msra.mxu0 0
        %1475 = vmatprep.subr.bf16.mxu0 0
        %1476 = vmatpush1.bf16.msra.mxu0 %v1459
        %1477 = vmatprep.subr.bf16.mxu0 0
        %1478 = vmatpush2.bf16.msra.mxu0 0
        %1479 = vmatprep.subr.bf16.mxu0 0
        %1480 = vmatpush2.bf16.msra.mxu0 0
        %1481 = vmatprep.subr.bf16.mxu0 0
        %1482 = vmatpush2.bf16.msra.mxu0 0
        %1483 = vmatprep.subr.bf16.mxu0 0
        %1484 = vmatpush2.bf16.msra.mxu0 0
        %1485 = vmatprep.subr.bf16.mxu0 0
        %1486 = vmatpush2.bf16.msra.mxu0 0
        %1487 = vmatprep.subr.bf16.mxu0 0
        %1488 = vmatpush2.bf16.msra.mxu0 0
        %1489 = vmatprep.subr.bf16.mxu0 0
        %1490 = vmatpush2.bf16.msra.mxu0 0
        %1491 = vmatprep.subr.bf16.mxu0 0
        %1492 = vmatpush2.bf16.msra.mxu0 0
        %1493 = vmatprep.mubr.bf16.mxu0 0
        %1494 = vmatmul.mubr.bf16.gmra.mxu0 %v1456
        %v1495 = vpop.f32.mrf.mxu0
        %v1496 = vadd.f32 0.0, %v1495
        %v1497 = vpop.f32.mrf.mxu0
        %v1498 = vpop.f32.mrf.mxu0
        %v1499 = vpop.f32.mrf.mxu0
        %1500 = vdwg.mxu0
        %v1502 = vsel %vm920, %v1358, 0
        %v1505 = vsel %vm1167, %v1362, 0
        %1507 = vmatprep.subr.bf16.mxu0 0
        %1508 = vmatpush1.bf16.msra.mxu0 0
        %1509 = vmatprep.subr.bf16.mxu0 0
        %1510 = vmatpush1.bf16.msra.mxu0 0
        %1511 = vmatprep.subr.bf16.mxu0 0
        %1512 = vmatpush1.bf16.msra.mxu0 0
        %1513 = vmatprep.subr.bf16.mxu0 0
        %1514 = vmatpush1.bf16.msra.mxu0 0
        %1515 = vmatprep.subr.bf16.mxu0 0
        %1516 = vmatpush1.bf16.msra.mxu0 0
        %1517 = vmatprep.subr.bf16.mxu0 0
        %1518 = vmatpush1.bf16.msra.mxu0 0
        %1519 = vmatprep.subr.bf16.mxu0 0
        %1520 = vmatpush1.bf16.msra.mxu0 0
        %1521 = vmatprep.subr.bf16.mxu0 0
        %1522 = vmatpush1.bf16.msra.mxu0 %v1505
        %1523 = vmatprep.subr.bf16.mxu0 0
        %1524 = vmatpush2.bf16.msra.mxu0 0
        %1525 = vmatprep.subr.bf16.mxu0 0
        %1526 = vmatpush2.bf16.msra.mxu0 0
        %1527 = vmatprep.subr.bf16.mxu0 0
        %1528 = vmatpush2.bf16.msra.mxu0 0
        %1529 = vmatprep.subr.bf16.mxu0 0
        %1530 = vmatpush2.bf16.msra.mxu0 0
        %1531 = vmatprep.subr.bf16.mxu0 0
        %1532 = vmatpush2.bf16.msra.mxu0 0
        %1533 = vmatprep.subr.bf16.mxu0 0
        %1534 = vmatpush2.bf16.msra.mxu0 0
        %1535 = vmatprep.subr.bf16.mxu0 0
        %1536 = vmatpush2.bf16.msra.mxu0 0
        %1537 = vmatprep.subr.bf16.mxu0 0
        %1538 = vmatpush2.bf16.msra.mxu0 0
        %1539 = vmatprep.mubr.bf16.mxu0 0
        %1540 = vmatmul.mubr.bf16.gmra.mxu0 %v1502
        %v1541 = vpop.f32.mrf.mxu0
        %v1542 = vadd.f32 0.0, %v1541
        %v1543 = vpop.f32.mrf.mxu0
        %v1544 = vpop.f32.mrf.mxu0
        %v1545 = vpop.f32.mrf.mxu0
        %1546 = vdwg.mxu0
        %v1547 = vsel %vm807, %v1404, 0.0
        %v1548 = vsel %vm807, %v1450, 0.0
        %v1549 = vadd.f32 %v1547, %v1548
        %v1550 = vsel %vm807, %v1496, 0.0
        %v1551 = vadd.f32 %v1549, %v1550
        %v1552 = vsel %vm807, %v1542, 0.0
        %v1553 = vadd.f32 %v1551, %v1552
        %v1554 = vadd.f32 %v804, %v1553
        %v1555 = vld [vmem:[%s768] sm:$0x1]
        %v1557 = vlaneseq
        %v1558 = vshrl.u32 %v1557, 7
        %v1559 = vsub.s32 0, %v1558
        %v1560 = vrot.slane %v1555, %v1559
        %v1562 = vadd.f32 %v1554, %v1560
        %v1563 = vld [vmem:[%s771] sm:$0x1]
        %v1564 = vld [vmem:[%s774] sm:$0x1]
        %v1565 = vsel %vm807, %v1562, 0.0
        %1566 = vadd.xlane.f32.xlu0 %v1565
        %v1567 = vpop.xlane.xlu0 %1566
        %v1568 = vmul.f32 %v1567, %v811
        %v1569 = vsub.f32 %v1562, %v1568
        %v1570 = vmul.f32 %v1569, %v1569
        %v1571 = vsel %vm807, %v1570, 0.0
        %1572 = vadd.xlane.f32.xlu0 %v1571
        %v1573 = vpop.xlane.xlu0 %1572
        %v1574 = vmul.f32 %v1573, %v811
        %v1575 = vadd.f32 %v1574, 1e-05
        %v1576 = vrsqrt.pop %v1575
        %v1577 = vmul.f32 %v1569, %v1576
        %v1579 = vlaneseq
        %v1580 = vshrl.u32 %v1579, 7
        %v1581 = vsub.s32 0, %v1580
        %v1582 = vrot.slane %v1563, %v1581
        %v1584 = vmul.f32 %v1577, %v1582
        %v1586 = vlaneseq
        %v1587 = vshrl.u32 %v1586, 7
        %v1588 = vsub.s32 0, %v1587
        %v1589 = vrot.slane %v1564, %v1588
        %v1591 = vadd.f32 %v1584, %v1589
        %v1592 = vpack.c.bf16 %v1591, %v1591
        %v1593 = vld [vmem:[%s779] sm:$0xf]
        %v1594 = vld [vmem:[%s779 + $0x4] sm:$0xf]
        %v1595 = vld [vmem:[%s779 + $0x8] sm:$0xf]
        %v1596 = vld [vmem:[%s779 + $0xc] sm:$0xf]
        %v1597 = vld [vmem:[%s782] sm:$0x1]
        %v1599 = vlaneseq
        %v1600 = vshrl.u32 %v1599, 7
        %v1601 = vsub.s32 0, %v1600
        %v1602 = vrot.slane %v1597, %v1601
        %v1608 = vunpack.c.l.b16 %v1593
        %v1609 = vunpack.c.l.b16 %v1594
        %v1610 = vunpack.c.l.b16 %v1595
        %v1611 = vunpack.c.l.b16 %v1596
        %v1612 = vpack.c.b16 %v1609, %v1608
        %v1613 = vpack.c.b16 %v1611, %v1610
        %v1617 = vsel %vm807, %v1592, 0
        %1619 = vmatprep.subr.bf16.mxu0 0
        %1620 = vmatpush1.bf16.msra.mxu0 0
        %1621 = vmatprep.subr.bf16.mxu0 0
        %1622 = vmatpush1.bf16.msra.mxu0 0
        %1623 = vmatprep.subr.bf16.mxu0 0
        %1624 = vmatpush1.bf16.msra.mxu0 0
        %1625 = vmatprep.subr.bf16.mxu0 0
        %1626 = vmatpush1.bf16.msra.mxu0 0
        %1627 = vmatprep.subr.bf16.mxu0 0
        %1628 = vmatpush1.bf16.msra.mxu0 0
        %1629 = vmatprep.subr.bf16.mxu0 0
        %1630 = vmatpush1.bf16.msra.mxu0 0
        %1631 = vmatprep.subr.bf16.mxu0 0
        %1632 = vmatpush1.bf16.msra.mxu0 %v1613
        %1633 = vmatprep.subr.bf16.mxu0 0
        %1634 = vmatpush1.bf16.msra.mxu0 %v1612
        %1635 = vmatprep.subr.bf16.mxu0 0
        %1636 = vmatpush2.bf16.msra.mxu0 0
        %1637 = vmatprep.subr.bf16.mxu0 0
        %1638 = vmatpush2.bf16.msra.mxu0 0
        %1639 = vmatprep.subr.bf16.mxu0 0
        %1640 = vmatpush2.bf16.msra.mxu0 0
        %1641 = vmatprep.subr.bf16.mxu0 0
        %1642 = vmatpush2.bf16.msra.mxu0 0
        %1643 = vmatprep.subr.bf16.mxu0 0
        %1644 = vmatpush2.bf16.msra.mxu0 0
        %1645 = vmatprep.subr.bf16.mxu0 0
        %1646 = vmatpush2.bf16.msra.mxu0 0
        %1647 = vmatprep.subr.bf16.mxu0 0
        %1648 = vmatpush2.bf16.msra.mxu0 0
        %1649 = vmatprep.subr.bf16.mxu0 0
        %1650 = vmatpush2.bf16.msra.mxu0 0
        %1651 = vmatprep.mubr.bf16.mxu0 0
        %1652 = vmatmul.mubr.bf16.gmra.mxu0 %v1617
        %v1653 = vpop.f32.mrf.mxu0
        %v1654 = vadd.f32 %v1602, %v1653
        %v1655 = vpop.f32.mrf.mxu0
        %v1656 = vpop.f32.mrf.mxu0
        %v1657 = vpop.f32.mrf.mxu0
        %1658 = vdwg.mxu0
        %v1659 = vmul.f32 %v1654, 0.5
        %v1660 = vmul.f32 %v1654, 0.70710677
        %v1661 = verf.f32.pop %v1660
        %v1662 = vadd.f32 %v1661, 1.0
        %v1663 = vmul.f32 %v1659, %v1662
        %v1664 = vpack.c.bf16 %v1663, %v1663
        %v1665 = vld [vmem:[%s787] sm:$0xf]
        %v1666 = vld [vmem:[%s787 + $0x4] sm:$0xf]
        %v1667 = vld [vmem:[%s787 + $0x8] sm:$0xf]
        %v1668 = vld [vmem:[%s787 + $0xc] sm:$0xf]
        %v1669 = vld [vmem:[%s787 + $0x10] sm:$0xf]
        %v1670 = vld [vmem:[%s787 + $0x14] sm:$0xf]
        %v1671 = vld [vmem:[%s787 + $0x18] sm:$0xf]
        %v1672 = vld [vmem:[%s787 + $0x1c] sm:$0xf]
        %v1673 = vld [vmem:[%s790] sm:$0x1]
        %v1675 = vlaneseq
        %v1676 = vshrl.u32 %v1675, 7
        %v1677 = vsub.s32 0, %v1676
        %v1678 = vrot.slane %v1673, %v1677
        %v1688 = vunpack.c.l.b16 %v1665
        %v1689 = vunpack.c.l.b16 %v1666
        %v1690 = vunpack.c.l.b16 %v1667
        %v1691 = vunpack.c.l.b16 %v1668
        %v1692 = vunpack.c.l.b16 %v1669
        %v1693 = vunpack.c.l.b16 %v1670
        %v1694 = vunpack.c.l.b16 %v1671
        %v1695 = vunpack.c.l.b16 %v1672
        %v1696 = vpack.c.b16 %v1689, %v1688
        %v1697 = vpack.c.b16 %v1691, %v1690
        %v1698 = vpack.c.b16 %v1693, %v1692
        %v1699 = vpack.c.b16 %v1695, %v1694
        %vm1704 = vcmask 523264
        %v1706 = vsel %vm1704, %v1664, 0
        %1708 = vmatprep.subr.bf16.mxu0 0
        %1709 = vmatpush1.bf16.msra.mxu0 0
        %1710 = vmatprep.subr.bf16.mxu0 0
        %1711 = vmatpush1.bf16.msra.mxu0 0
        %1712 = vmatprep.subr.bf16.mxu0 0
        %1713 = vmatpush1.bf16.msra.mxu0 0
        %1714 = vmatprep.subr.bf16.mxu0 0
        %1715 = vmatpush1.bf16.msra.mxu0 0
        %1716 = vmatprep.subr.bf16.mxu0 0
        %1717 = vmatpush1.bf16.msra.mxu0 %v1699
        %1718 = vmatprep.subr.bf16.mxu0 0
        %1719 = vmatpush1.bf16.msra.mxu0 %v1698
        %1720 = vmatprep.subr.bf16.mxu0 0
        %1721 = vmatpush1.bf16.msra.mxu0 %v1697
        %1722 = vmatprep.subr.bf16.mxu0 0
        %1723 = vmatpush1.bf16.msra.mxu0 %v1696
        %1724 = vmatprep.subr.bf16.mxu0 0
        %1725 = vmatpush2.bf16.msra.mxu0 0
        %1726 = vmatprep.subr.bf16.mxu0 0
        %1727 = vmatpush2.bf16.msra.mxu0 0
        %1728 = vmatprep.subr.bf16.mxu0 0
        %1729 = vmatpush2.bf16.msra.mxu0 0
        %1730 = vmatprep.subr.bf16.mxu0 0
        %1731 = vmatpush2.bf16.msra.mxu0 0
        %1732 = vmatprep.subr.bf16.mxu0 0
        %1733 = vmatpush2.bf16.msra.mxu0 0
        %1734 = vmatprep.subr.bf16.mxu0 0
        %1735 = vmatpush2.bf16.msra.mxu0 0
        %1736 = vmatprep.subr.bf16.mxu0 0
        %1737 = vmatpush2.bf16.msra.mxu0 0
        %1738 = vmatprep.subr.bf16.mxu0 0
        %1739 = vmatpush2.bf16.msra.mxu0 0
        %1740 = vmatprep.mubr.bf16.mxu0 0
        %1741 = vmatmul.mubr.bf16.gmra.mxu0 %v1706
        %v1742 = vpop.f32.mrf.mxu0
        %v1743 = vadd.f32 %v1678, %v1742
        %v1744 = vpop.f32.mrf.mxu0
        %v1745 = vpop.f32.mrf.mxu0
        %v1746 = vpop.f32.mrf.mxu0
        %1747 = vdwg.mxu0
        %v1748 = vadd.f32 %v1562, %v1743
        %1749 = vst.msk [vmem:[#allocation2] sm:$0xff] %vm807, %v1748
        %p1750 = scmp.eq.s32.totalorder %s44, 1
        %p1751 = scmp.ne.s32.totalorder %s44, 1
        // Predicated region
        $region97: #{tpu_custom_call.1} parent=83 // pred_check
          %p1752 = pneg %p1751
        $region98: #{tpu_custom_call.1} parent=83 // pred_check_branch
          %1754 = sbr.rel (%p1752) target = $region100
        $region99: #{tpu_custom_call.1} parent=83 // pred_region
          %v1755 = vld [vmem:[#allocation3] sm:$0xff]
          %s1756 = sadd.s32 %s44, 1
          %s1757 = sld [smem:[#allocation4 + %s1756]]
          %s1758 = scvt.s32.f32 %s1757
          %v1759 = vstv %s1758
          %v1760 = vmul.f32 %v1759, %v1748
          %v1761 = vadd.f32 %v1755, %v1760
          %1762 = vst.msk [vmem:[#allocation3] sm:$0xff] %vm807, %v1761
        $region100: #{tpu_custom_call.1} parent=83 // pred_fallthru
          _
        // Predicated region
        $region101: #{tpu_custom_call.1} parent=83 // pred_check
          %p1763 = pneg %p1750
        $region102: #{tpu_custom_call.1} parent=83 // pred_check_branch
          %1765 = sbr.rel (%p1763) target = $region104
        $region103: #{tpu_custom_call.1} parent=83 // pred_region
          %v1766 = vld [vmem:[%s14] sm:$0x1]
          %v1767 = vld [vmem:[%s15] sm:$0x1]
          %v1768 = vsel %vm807, %v1748, 0.0
          %1769 = vadd.xlane.f32.xlu0 %v1768
          %v1770 = vpop.xlane.xlu0 %1769
          %v1771 = vmul.f32 %v1770, %v811
          %v1772 = vsub.f32 %v1748, %v1771
          %v1773 = vmul.f32 %v1772, %v1772
          %v1774 = vsel %vm807, %v1773, 0.0
          %1775 = vadd.xlane.f32.xlu0 %v1774
          %v1776 = vpop.xlane.xlu0 %1775
          %v1777 = vmul.f32 %v1776, %v811
          %v1778 = vadd.f32 %v1777, 1e-05
          %v1779 = vrsqrt.pop %v1778
          %v1780 = vmul.f32 %v1772, %v1779
          %v1782 = vlaneseq
          %v1783 = vshrl.u32 %v1782, 7
          %v1784 = vsub.s32 0, %v1783
          %v1785 = vrot.slane %v1766, %v1784
          %v1787 = vmul.f32 %v1780, %v1785
          %v1789 = vlaneseq
          %v1790 = vshrl.u32 %v1789, 7
          %v1791 = vsub.s32 0, %v1790
          %v1792 = vrot.slane %v1767, %v1791
          %v1794 = vadd.f32 %v1787, %v1792
          %1795 = vst.msk [vmem:[%s739] sm:$0xff] %vm807, %v1794
          %v1796 = vld [vmem:[#allocation3] sm:$0xff]
          %s1797 = sadd.s32 %s44, 1
          %s1798 = sld [smem:[#allocation4 + %s1797]]
          %s1799 = scvt.s32.f32 %s1798
          %v1800 = vstv %s1799
          %v1801 = vmul.f32 %v1800, %v1794
          %v1802 = vadd.f32 %v1796, %v1801
          %v1803 = vmul.f32 %v1802, 0.5
          %1804 = vst.msk [vmem:[%s746] sm:$0xff] %vm807, %v1803
        $region104: #{tpu_custom_call.1} parent=83 // pred_fallthru
          _
        %s1805 = sand.u32 %s460, 1
        %s1806 = scalar_lea.sflag [#allocation6], %s1805
        %s1807 = sand.u32 %s460, 1
        %s1808 = smul.addr %s1807, 8
        %s1809 = scalar_lea.vmem [#allocation9], %s1808
        %s1810 = sand.u32 %s486, 1
        %s1811 = scalar_lea.sflag [#allocation11], %s1810
        %s1812 = sand.u32 %s486, 1
        %s1813 = smul.addr %s1812, 8
        %s1814 = scalar_lea.vmem [#allocation10], %s1813
        // Predicated region
        $region105: #{tpu_custom_call.1} parent=83 // pred_check
          %p1815 = pneg %p470
        $region106: #{tpu_custom_call.1} parent=83 // pred_check_branch
          %1817 = sbr.rel (%p1815) target = $region108
        $region107: #{tpu_custom_call.1} parent=83 // pred_region
          %s1819 = ssub.s32 128, 128
          %1820 = vsyncadd %s1806, %s1819
          %s1821 = smul.addr %s43, 128
          %s1822 = scalar_lea.hbm %s16, %s1821
          %s1824 = sshll.u32 %s1809, 4
          %s1825 = int_to_ptr.vmem [resolvable:$true] %s1824
          %1827 = dma.vmem_to_hbm [thread:$0]  %s1825, 128, %s1822, %s1806
        $region108: #{tpu_custom_call.1} parent=83 // pred_fallthru
          _
        // Predicated region
        $region109: #{tpu_custom_call.1} parent=83 // pred_check
          %p1828 = pneg %p496
        $region110: #{tpu_custom_call.1} parent=83 // pred_check_branch
          %1830 = sbr.rel (%p1828) target = $region112
        $region111: #{tpu_custom_call.1} parent=83 // pred_region
          %s1832 = ssub.s32 128, 128
          %1833 = vsyncadd %s1811, %s1832
          %s1834 = smul.addr %s43, 128
          %s1835 = scalar_lea.hbm %s17, %s1834
          %s1837 = sshll.u32 %s1814, 4
          %s1838 = int_to_ptr.vmem [resolvable:$true] %s1837
          %1840 = dma.vmem_to_hbm [thread:$0]  %s1838, 128, %s1835, %s1811
        $region112: #{tpu_custom_call.1} parent=83 // pred_fallthru
          _
      $region84: #{tpu_custom_call.1} parent=5 // pred_fallthru
        _
      %p1841 = scmp.le.s32.totalorder 2, %s34
      // Predicated region
      $region113: #{tpu_custom_call.1} parent=5 // pred_check
        %p1842 = pneg %p1841
      $region114: #{tpu_custom_call.1} parent=5 // pred_check_branch
        %1844 = sbr.rel (%p1842) target = $region116
      $region115: #{tpu_custom_call.1} parent=5 // pred_region
        %s1845 = ssub.s32 %s34, 2
        // Predicated region
        $region117: #{tpu_custom_call.1} parent=115 // pred_check
          %p1846 = pneg %p476
        $region118: #{tpu_custom_call.1} parent=115 // pred_check_branch
          %1848 = sbr.rel (%p1846) target = $region120
        $region119: #{tpu_custom_call.1} parent=115 // pred_region
          %s1849 = sand.u32 %s461, 1
          %s1850 = scalar_lea.sflag [#allocation6], %s1849
          %s1851 = sand.u32 %s461, 1
          %s1852 = smul.addr %s1851, 8
          %s1853 = scalar_lea.vmem [#allocation9], %s1852
          %1854 = dma.done %s1850, 128
        $region120: #{tpu_custom_call.1} parent=115 // pred_fallthru
          _
        // Predicated region
        $region121: #{tpu_custom_call.1} parent=115 // pred_check
          %p1855 = pneg %p502
        $region122: #{tpu_custom_call.1} parent=115 // pred_check_branch
          %1857 = sbr.rel (%p1855) target = $region124
        $region123: #{tpu_custom_call.1} parent=115 // pred_region
          %s1858 = sand.u32 %s487, 1
          %s1859 = scalar_lea.sflag [#allocation11], %s1858
          %s1860 = sand.u32 %s487, 1
          %s1861 = smul.addr %s1860, 8
          %s1862 = scalar_lea.vmem [#allocation10], %s1861
          %1863 = dma.done %s1859, 128
        $region124: #{tpu_custom_call.1} parent=115 // pred_fallthru
          _
      $region116: #{tpu_custom_call.1} parent=5 // pred_fallthru
        _
    $region6: #{tpu_custom_call.1} parent=1 // loop_footer
      %s38 = sadd.s32 1, %s34
    $region7: #{tpu_custom_call.1} parent=1 // loop_footer_branch
      %33 = sbr.rel target = $region3
    $region8: #{tpu_custom_call.1} parent=1 // loop_exit
      _
    %1864 = vsyncpa [#allocation5], 1
    %s1865 = scalar_lea.sflag [#allocation5], 1
    %1866 = vsyncpa %s1865, 1
    %1867 = vsyncpa [#allocation6], 1
    %s1868 = scalar_lea.sflag [#allocation6], 1
    %1869 = vsyncpa %s1868, 1
    %1870 = vsyncpa [#allocation11], 1
    %s1871 = scalar_lea.sflag [#allocation11], 1
    %1872 = vsyncpa %s1871, 1
    %1873 = vsyncpa [#allocation7], 1
    %s1874 = scalar_lea.sflag [#allocation7], 1
    %1875 = vsyncpa %s1874, 1

</llo_original>
